<compile_context>
chip_gen: v5e
topology: v5e:2x2
jax: 0.10.0
libtpu: 0.0.40
codegen_flags: <defaults>
</compile_context>

<pallas_src>
import jax
import jax.numpy as jnp
import numpy as np
from jax import lax
from jax.experimental import pallas as pl
from jax.experimental.pallas import tpu as pltpu

_RGB_WEIGHTS = (0.2989, 0.587, 0.114)
# Per-row VMEM estimate: double-buffered main inputs (~112 B/row/lane) plus the
# live stencil temporaries (extended gray, gradients, pools).
_PER_ROW_BYTES = 200


def _vmem_config():
    """(row-band budget bytes, vmem_limit_bytes) tuned per TPU generation."""
    try:
        cap = pltpu.get_tpu_info().vmem_capacity_bytes
    except Exception:
        cap = None
    if cap is not None and cap >= 100 * 1024 * 1024:
        # v5e / v6e: 128 MiB VMEM -> large row bands amortize the fixed 8-row
        # halo DMAs and the ~0.35 us per-step grid overhead.
        return 48 * 1024 * 1024, 96 * 1024 * 1024
    # v7x (64 MiB per TensorCore) or unknown hardware: stay conservative.
    return 20 * 1024 * 1024, 48 * 1024 * 1024


def _pick_h_tile(height, width, budget_bytes):
    best = 8
    for cand in range(8, height + 1, 8):
        if height % cand == 0 and _PER_ROW_BYTES * cand * width <= budget_bytes:
            best = cand
    # TODO(synk): support a ragged last row band (mask rows >= H) so odd image
    # heights don't fall back to tiny divisors of H.
    return best


# ----------------------------- in-kernel helpers -----------------------------
def _gray(r):
    # r: (3, rows, W) planar RGB -> luma, rows x W.
    return (_RGB_WEIGHTS[0] * r[0] + _RGB_WEIGHTS[1] * r[1]
            + _RGB_WEIGHTS[2] * r[2])


def _shift_lane(x, offset, mask):
    """y[..., j] = x[..., j - offset], zero out of range.

    `mask` is the precomputed (1, W) validity mask for this offset (hoisted so
    each shift costs one select instead of iota + compares + select)."""
    w = x.shape[-1]
    if w % 128 == 0:
        rolled = pltpu.roll(x, shift=offset % w, axis=x.ndim - 1)
        return jnp.where(mask, rolled, 0.0)
    # Unaligned-W fallback: explicit zero pad + slice (already zero-filled, so
    # no mask is needed).  Correct but slow; prefer W % 128 == 0.
    pad_shape = x.shape[:-1] + (abs(offset),)
    zeros = jnp.zeros(pad_shape, x.dtype)
    if offset > 0:
        kept = lax.slice_in_dim(x, 0, w - offset, axis=x.ndim - 1)
        return jnp.concatenate([zeros, kept], axis=x.ndim - 1)
    kept = lax.slice_in_dim(x, -offset, w, axis=x.ndim - 1)
    return jnp.concatenate([kept, zeros], axis=x.ndim - 1)


def _shift_rows(x, offset):
    """Row shift via XLU roll WITHOUT wrap masking: callers only read rows for
    which the wrapped values are discarded (row extents are multiples of 8)."""
    n = x.shape[-2]
    return pltpu.roll(x, shift=offset % n, axis=x.ndim - 2)


def _fold_to_vreg(x):
    """Fold a (rows, W) f32 tile into an (8, 128) partial using vreg-aligned
    static slices + VALU adds only (no per-step cross-lane XLU reduction)."""
    rows, w = x.shape
    if w % 128 != 0:
        x = jnp.pad(x, ((0, 0), (0, (-w) % 128)))
        w = x.shape[-1]
    acc_rows = x[0:8, :]
    for i in range(1, rows // 8):
        acc_rows = acc_rows + x[i * 8:(i + 1) * 8, :]
    acc = acc_rows[:, 0:128]
    for j in range(1, w // 128):
        acc = acc + acc_rows[:, j * 128:(j + 1) * 128]
    return acc


def _smooth_band(l_main, l_prev_last, r_main, r_prev, r_next,
                 grow_valid, lane_ge1, lane_lt_last, row0):
    """Per-pixel integrand of smooth(l, r) for one (th, W) row band.

    Halo rows arrive as clamped 8-row blocks of the same arrays; `grow_valid`
    (global row in [0, H)) neutralises them so the stencils reproduce the
    reference's zero padding exactly."""
    th, _ = l_main.shape

    # Luma over [prev 8 | main th | next 8]; rows outside the image are zeroed
    # so grad_x there is 0 and grad_y at global row 0 sees a zero above it.
    g_ext = jnp.concatenate([_gray(r_prev), _gray(r_main), _gray(r_next)],
                            axis=0)
    g_ext = jnp.where(grow_valid, g_ext, 0.0)

    # Gradients of luma.  grad_x needs only the lane mask (rows >= H already
    # zero); grad_y's sublane wrap lands in ext row 0 (never read) and rows
    # >= H are re-zeroed to match the reference's zero-padded gradient.
    gx = jnp.abs(g_ext - _shift_lane(g_ext, 1, lane_ge1))
    gy = jnp.abs(g_ext - _shift_rows(g_ext, 1))
    gy = jnp.where(grow_valid, gy, 0.0)

    # Separable 3x3 box *sum* (the avg_pool 1/9 is folded into the exp).  The
    # vertical roll wraps only pollute ext rows 0 / -1, discarded by the crop.
    def pool3(g):
        a = g + _shift_rows(g, 1) + _shift_rows(g, -1)
        b = a + _shift_lane(a, 1, lane_ge1) + _shift_lane(a, -1, lane_lt_last)
        return b[8:8 + th]

    px = pool3(gx)
    py = pool3(gy)

    # Gradients of the illumination band; the row above the band comes from the
    # prev halo's last row (zero at the image top) instead of a concat copy.
    gx_l = jnp.abs(l_main - _shift_lane(l_main, 1, lane_ge1))
    l_above = jnp.where(row0, l_prev_last, _shift_rows(l_main, 1))
    gy_l = jnp.abs(l_main - l_above)

    # exp(-10 * avg_pool3(grad)) == exp(-10/9 * pooled_sum); exp -> EUP slot.
    return (gx_l * jnp.exp((-10.0 / 9.0) * px)
            + gy_l * jnp.exp((-10.0 / 9.0) * py))


# ------------------------------ planar entry point ---------------------------
def decom_loss_planar(r_low, l_low, r_high, l_high, input_low, input_high,
                      *, h_tile=None):
    """Planar inputs: r_*/input_*: (B, 3, H, W) f32;  l_*: (B, H, W) f32."""
    B, C, H, W = r_low.shape
    if C != 3:
        raise ValueError("expected 3 channels")
    if H % 8 != 0:
        raise ValueError("H must be a multiple of 8")
    budget, vmem_limit = _vmem_config()
    if h_tile is None:
        h_tile = _pick_h_tile(H, W, budget)
    th = int(h_tile)
    if th % 8 != 0 or H % th != 0:
        raise ValueError("h_tile must divide H and be a multiple of 8")
    n_h_tiles = H // th
    n_h_blocks = H // 8
    hb = th // 8
    re_rows = th + 16

    recon_scale = 1.0 / (B * 3 * H * W)      # mean over (B, 3, H, W)
    smooth_scale = 0.1 / (B * H * W)         # 0.1 * mean over (B, H, W, 1)

    def kernel(r_l_ref, r_l_prev_ref, r_l_next_ref,
               l_l_ref, l_l_prev_ref,
               r_h_ref, r_h_prev_ref, r_h_next_ref,
               l_h_ref, l_h_prev_ref,
               i_l_ref, i_h_ref,
               out_ref):
        t = pl.program_id(1)

        r_l = r_l_ref[...]          # (3, th, W)
        r_h = r_h_ref[...]
        l_l = l_l_ref[...]          # (th, W)
        l_h = l_h_ref[...]
        i_l = i_l_ref[...]
        i_h = i_h_ref[...]

        # ---- shift/validity masks: built ONCE per step, reused by every
        # stencil shift below (previously each shift rebuilt a full-tile iota).
        lane = lax.broadcasted_iota(jnp.int32, (1, W), 1)
        lane_ge1 = lane >= 1                         # lane shift +1
        lane_lt_last = lane < (W - 1)                # lane shift -1
        g_row = t * th - 8 + lax.broadcasted_iota(jnp.int32, (re_rows, 1), 0)
        grow_valid = jnp.logical_and(g_row >= 0, g_row < H)
        row0 = lax.broadcasted_iota(jnp.int32, (th, 1), 0) == 0

        # ---- reconstruction / mutual / equal-R terms (weights folded in) ----
        recon_sum = None
        for c in range(3):
            term = (jnp.abs(r_l[c] * l_l - i_l[c])
                    + jnp.abs(r_h[c] * l_h - i_h[c])
                    + 0.001 * (jnp.abs(r_h[c] * l_l - i_l[c])
                               + jnp.abs(r_l[c] * l_h - i_h[c]))
                    + 0.01 * jnp.abs(r_l[c] - r_h[c]))
            recon_sum = term if recon_sum is None else recon_sum + term

        # ---- illumination smoothness terms ----
        in_band = (t > 0).astype(jnp.float32)        # zero the row above at t=0
        prev_l = l_l_prev_ref[7:8, :] * in_band
        prev_h = l_h_prev_ref[7:8, :] * in_band
        sm_low = _smooth_band(l_l, prev_l, r_l, r_l_prev_ref[...],
                              r_l_next_ref[...], grow_valid, lane_ge1,
                              lane_lt_last, row0)
        sm_high = _smooth_band(l_h, prev_h, r_h, r_h_prev_ref[...],
                               r_h_next_ref[...], grow_valid, lane_ge1,
                               lane_lt_last, row0)

        contrib = (recon_scale * recon_sum
                   + smooth_scale * (sm_low + sm_high))
        # Each grid step owns its own (8, 128) partial -> no accumulator, both
        # grid axes can be "parallel" (v7x megacore), and the final reduction
        # happens as an XLA tree-sum outside the kernel.
        out_ref[...] = _fold_to_vreg(contrib)

    # Main (disjoint) row-band blocks + clamped 8-row halo blocks of the same
    # arrays (masked in-kernel at the image boundaries).
    r_spec = pl.BlockSpec((None, 3, th, W), lambda b, t: (b, 0, t, 0))
    l_spec = pl.BlockSpec((None, th, W), lambda b, t: (b, t, 0))
    r_prev_spec = pl.BlockSpec(
        (None, 3, 8, W), lambda b, t: (b, 0, jnp.maximum(t * hb - 1, 0), 0))
    r_next_spec = pl.BlockSpec(
        (None, 3, 8, W),
        lambda b, t: (b, 0, jnp.minimum((t + 1) * hb, n_h_blocks - 1), 0))
    l_prev_spec = pl.BlockSpec(
        (None, 8, W), lambda b, t: (b, jnp.maximum(t * hb - 1, 0), 0))

    # TODO(synk): on v5e a VMEM row-carry of the previous band (instead of the
    # *_prev halo re-fetch) would cut HBM traffic further, but it serialises
    # the t axis and conflicts with the parallel grid used for v7x megacore.
    partials = pl.pallas_call(
        kernel,
        out_shape=jax.ShapeDtypeStruct((B, n_h_tiles, 8, 128), jnp.float32),
        grid=(B, n_h_tiles),
        in_specs=[r_spec, r_prev_spec, r_next_spec, l_spec, l_prev_spec,
                  r_spec, r_prev_spec, r_next_spec, l_spec, l_prev_spec,
                  r_spec, r_spec],
        out_specs=pl.BlockSpec((None, None, 8, 128), lambda b, t: (b, t, 0, 0)),
        compiler_params=pltpu.CompilerParams(
            dimension_semantics=("parallel", "parallel"),
            vmem_limit_bytes=vmem_limit),
    )(r_low, r_low, r_low, l_low, l_low,
      r_high, r_high, r_high, l_high, l_high,
      input_low, input_high)
    return jnp.sum(partials)


# ------------------------------- NHWC wrapper --------------------------------
def decom_loss(r_low, l_low, r_high, l_high, input_low, input_high,
               *, h_tile=None):
    """NHWC interface matching the PyTorch module:
       r_*/input_*: (B, H, W, 3);  l_*: (B, H, W, 1).  Returns scalar loss.

    NOTE: the transpose/cast below is an extra XLA HBM pass over all six
    tensors (roughly doubles the op's HBM traffic, worst on v5e); callers that
    already hold planar (B,3,H,W) data should call decom_loss_planar directly
    or fold the layout change into a preceding fused op."""
    to_planar = lambda x: jnp.transpose(x.astype(jnp.float32), (0, 3, 1, 2))
    squeeze_l = lambda x: x[..., 0].astype(jnp.float32)
    return decom_loss_planar(
        to_planar(r_low), squeeze_l(l_low),
        to_planar(r_high), squeeze_l(l_high),
        to_planar(input_low), to_planar(input_high), h_tile=h_tile)


# ------------------------- pure-JAX reference (NHWC) -------------------------
def _ref_gradient(x, direction):
    v = x[..., 0]                                    # (B, H, W)
    if direction == "x":
        prev = jnp.pad(v, ((0, 0), (0, 0), (1, 0)))[:, :, :-1]
    else:
        prev = jnp.pad(v, ((0, 0), (1, 0), (0, 0)))[:, :-1, :]
    return jnp.abs(v - prev)[..., None]


def _ref_ave_gradient(x, direction):
    g = _ref_gradient(x, direction)[..., 0]
    hh, ww = g.shape[1], g.shape[2]
    gp = jnp.pad(g, ((0, 0), (1, 1), (1, 1)))
    s = sum(gp[:, i:i + hh, j:j + ww] for i in range(3) for j in range(3))
    return (s / 9.0)[..., None]


def _ref_smooth(l, r):
    w = jnp.array(_RGB_WEIGHTS, jnp.float32)
    gray = jnp.tensordot(r, w, axes=([-1], [-1]))[..., None]
    return jnp.mean(
        _ref_gradient(l, "x") * jnp.exp(-10.0 * _ref_ave_gradient(gray, "x"))
        + _ref_gradient(l, "y") * jnp.exp(-10.0 * _ref_ave_gradient(gray, "y")))


def decom_loss_reference(r_low, l_low, r_high, l_high, input_low, input_high):
    l_low3 = jnp.concatenate([l_low] * 3, axis=-1)
    l_high3 = jnp.concatenate([l_high] * 3, axis=-1)
    recon_low = jnp.mean(jnp.abs(r_low * l_low3 - input_low))
    recon_high = jnp.mean(jnp.abs(r_high * l_high3 - input_high))
    mutal_low = jnp.mean(jnp.abs(r_high * l_low3 - input_low))
    mutal_high = jnp.mean(jnp.abs(r_low * l_high3 - input_high))
    equal_r = jnp.mean(jnp.abs(r_low - r_high))
    sm_low = _ref_smooth(l_low, r_low)
    sm_high = _ref_smooth(l_high, r_high)
    return (recon_low + recon_high + 0.001 * mutal_low + 0.001 * mutal_high
            + 0.1 * sm_low + 0.1 * sm_high + 0.01 * equal_r)


# ------------------------------------ main ------------------------------------
if __name__ == "__main__":
    key = jax.random.PRNGKey(0)
    B, H, W = 2, 16, 128      # W multiple of 128 -> lane-dense tiles
    ks = jax.random.split(key, 6)
    r_low = jax.random.uniform(ks[0], (B, H, W, 3), jnp.float32)
    l_low = jax.random.uniform(ks[1], (B, H, W, 1), jnp.float32)
    r_high = jax.random.uniform(ks[2], (B, H, W, 3), jnp.float32)
    l_high = jax.random.uniform(ks[3], (B, H, W, 1), jnp.float32)
    input_low = jax.random.uniform(ks[4], (B, H, W, 3), jnp.float32)
    input_high = jax.random.uniform(ks[5], (B, H, W, 3), jnp.float32)

    # h_tile=8 -> two row-bands per image, so the cross-tile halo path is used.
    fn = jax.jit(lambda *a: decom_loss(*a, h_tile=8))
    loss = fn(r_low, l_low, r_high, l_high, input_low, input_high)
    jax.block_until_ready(loss)

    ref = jax.jit(decom_loss_reference)(r_low, l_low, r_high, l_high,
                                        input_low, input_high)
    np.testing.assert_allclose(np.asarray(loss), np.asarray(ref),
                               rtol=1e-4, atol=1e-5)
    print("KERNEL_OK")
</pallas_src>

<mosaic_0001>
module attributes {stable_mosaic.version = 11 : i64} {
  func.func @kernel(%arg0: i32, %arg1: i32, %arg2: memref<1x3x8x128xf32, #tpu.memory_space<vmem>>, %arg3: memref<1x3x8x128xf32, #tpu.memory_space<vmem>>, %arg4: memref<1x3x8x128xf32, #tpu.memory_space<vmem>>, %arg5: memref<1x8x128xf32, #tpu.memory_space<vmem>>, %arg6: memref<1x8x128xf32, #tpu.memory_space<vmem>>, %arg7: memref<1x3x8x128xf32, #tpu.memory_space<vmem>>, %arg8: memref<1x3x8x128xf32, #tpu.memory_space<vmem>>, %arg9: memref<1x3x8x128xf32, #tpu.memory_space<vmem>>, %arg10: memref<1x8x128xf32, #tpu.memory_space<vmem>>, %arg11: memref<1x8x128xf32, #tpu.memory_space<vmem>>, %arg12: memref<1x3x8x128xf32, #tpu.memory_space<vmem>>, %arg13: memref<1x3x8x128xf32, #tpu.memory_space<vmem>>, %arg14: memref<1x1x8x128xf32, #tpu.memory_space<vmem>>) attributes {dimension_semantics = [#tpu.dimension_semantics<parallel>, #tpu.dimension_semantics<parallel>], iteration_bounds = array<i64: 2, 2>, scalar_prefetch = 0 : i64, scratch_operands = 0 : i64, tpu.core_type = #tpu.core_type<tc>, window_params = [{transform_indices = @transform_0, window_bounds = array<i64: 1, 3, 8, 128>}, {transform_indices = @transform_1, window_bounds = array<i64: 1, 3, 8, 128>}, {transform_indices = @transform_2, window_bounds = array<i64: 1, 3, 8, 128>}, {transform_indices = @transform_3, window_bounds = array<i64: 1, 8, 128>}, {transform_indices = @transform_4, window_bounds = array<i64: 1, 8, 128>}, {transform_indices = @transform_5, window_bounds = array<i64: 1, 3, 8, 128>}, {transform_indices = @transform_6, window_bounds = array<i64: 1, 3, 8, 128>}, {transform_indices = @transform_7, window_bounds = array<i64: 1, 3, 8, 128>}, {transform_indices = @transform_8, window_bounds = array<i64: 1, 8, 128>}, {transform_indices = @transform_9, window_bounds = array<i64: 1, 8, 128>}, {transform_indices = @transform_10, window_bounds = array<i64: 1, 3, 8, 128>}, {transform_indices = @transform_11, window_bounds = array<i64: 1, 3, 8, 128>}, {transform_indices = @transform_12, window_bounds = array<i64: 1, 1, 8, 128>}]} {
    %c0 = arith.constant 0 : index
    %c0_0 = arith.constant 0 : index
    %c0_1 = arith.constant 0 : index
    %c0_2 = arith.constant 0 : index
    %0 = vector.load %arg2[%c0, %c0_0, %c0_1, %c0_2] : memref<1x3x8x128xf32, #tpu.memory_space<vmem>>, vector<1x3x8x128xf32>
    %1 = vector.shape_cast %0 : vector<1x3x8x128xf32> to vector<3x8x128xf32>
    %c0_3 = arith.constant 0 : index
    %c0_4 = arith.constant 0 : index
    %c0_5 = arith.constant 0 : index
    %c0_6 = arith.constant 0 : index
    %2 = vector.load %arg7[%c0_3, %c0_4, %c0_5, %c0_6] : memref<1x3x8x128xf32, #tpu.memory_space<vmem>>, vector<1x3x8x128xf32>
    %3 = vector.shape_cast %2 : vector<1x3x8x128xf32> to vector<3x8x128xf32>
    %c0_7 = arith.constant 0 : index
    %c0_8 = arith.constant 0 : index
    %c0_9 = arith.constant 0 : index
    %4 = vector.load %arg5[%c0_7, %c0_8, %c0_9] : memref<1x8x128xf32, #tpu.memory_space<vmem>>, vector<1x8x128xf32>
    %5 = vector.shape_cast %4 : vector<1x8x128xf32> to vector<8x128xf32>
    %c0_10 = arith.constant 0 : index
    %c0_11 = arith.constant 0 : index
    %c0_12 = arith.constant 0 : index
    %6 = vector.load %arg10[%c0_10, %c0_11, %c0_12] : memref<1x8x128xf32, #tpu.memory_space<vmem>>, vector<1x8x128xf32>
    %7 = vector.shape_cast %6 : vector<1x8x128xf32> to vector<8x128xf32>
    %c0_13 = arith.constant 0 : index
    %c0_14 = arith.constant 0 : index
    %c0_15 = arith.constant 0 : index
    %c0_16 = arith.constant 0 : index
    %8 = vector.load %arg12[%c0_13, %c0_14, %c0_15, %c0_16] : memref<1x3x8x128xf32, #tpu.memory_space<vmem>>, vector<1x3x8x128xf32>
    %9 = vector.shape_cast %8 : vector<1x3x8x128xf32> to vector<3x8x128xf32>
    %c0_17 = arith.constant 0 : index
    %c0_18 = arith.constant 0 : index
    %c0_19 = arith.constant 0 : index
    %c0_20 = arith.constant 0 : index
    %10 = vector.load %arg13[%c0_17, %c0_18, %c0_19, %c0_20] : memref<1x3x8x128xf32, #tpu.memory_space<vmem>>, vector<1x3x8x128xf32>
    %11 = vector.shape_cast %10 : vector<1x3x8x128xf32> to vector<3x8x128xf32>
    %12 = tpu.iota {dimensions = array<i32: 1>} : vector<1x128xi32>
    %c1_i32 = arith.constant 1 : i32
    %13 = vector.broadcast %c1_i32 : i32 to vector<1x128xi32>
    %14 = arith.cmpi sge, %12, %13 : vector<1x128xi32>
    %c127_i32 = arith.constant 127 : i32
    %15 = vector.broadcast %c127_i32 : i32 to vector<1x128xi32>
    %16 = arith.cmpi slt, %12, %15 : vector<1x128xi32>
    %c8_i32 = arith.constant 8 : i32
    %17 = arith.muli %arg1, %c8_i32 : i32
    %c8_i32_21 = arith.constant 8 : i32
    %18 = arith.subi %17, %c8_i32_21 : i32
    %19 = tpu.iota {dimensions = array<i32: 0>} : vector<24x1xi32>
    %20 = vector.broadcast %18 : i32 to vector<24x1xi32>
    %21 = arith.addi %20, %19 : vector<24x1xi32>
    %c0_i32 = arith.constant 0 : i32
    %22 = vector.broadcast %c0_i32 : i32 to vector<24x1xi32>
    %23 = arith.cmpi sge, %21, %22 : vector<24x1xi32>
    %c16_i32 = arith.constant 16 : i32
    %24 = vector.broadcast %c16_i32 : i32 to vector<24x1xi32>
    %25 = arith.cmpi slt, %21, %24 : vector<24x1xi32>
    %26 = arith.andi %23, %25 : vector<24x1xi1>
    %27 = tpu.iota {dimensions = array<i32: 0>} : vector<8x1xi32>
    %c0_i32_22 = arith.constant 0 : i32
    %28 = vector.broadcast %c0_i32_22 : i32 to vector<8x1xi32>
    %29 = arith.cmpi eq, %27, %28 : vector<8x1xi32>
    %30 = vector.extract_strided_slice %1 {offsets = [0, 0, 0], sizes = [1, 8, 128], strides = [1, 1, 1]} : vector<3x8x128xf32> to vector<1x8x128xf32>
    %31 = vector.shape_cast %30 : vector<1x8x128xf32> to vector<8x128xf32>
    %32 = arith.mulf %31, %5 : vector<8x128xf32>
    %33 = vector.extract_strided_slice %9 {offsets = [0, 0, 0], sizes = [1, 8, 128], strides = [1, 1, 1]} : vector<3x8x128xf32> to vector<1x8x128xf32>
    %34 = vector.shape_cast %33 : vector<1x8x128xf32> to vector<8x128xf32>
    %35 = arith.subf %32, %34 : vector<8x128xf32>
    %36 = math.absf %35 : vector<8x128xf32>
    %37 = vector.extract_strided_slice %3 {offsets = [0, 0, 0], sizes = [1, 8, 128], strides = [1, 1, 1]} : vector<3x8x128xf32> to vector<1x8x128xf32>
    %38 = vector.shape_cast %37 : vector<1x8x128xf32> to vector<8x128xf32>
    %39 = arith.mulf %38, %7 : vector<8x128xf32>
    %40 = vector.extract_strided_slice %11 {offsets = [0, 0, 0], sizes = [1, 8, 128], strides = [1, 1, 1]} : vector<3x8x128xf32> to vector<1x8x128xf32>
    %41 = vector.shape_cast %40 : vector<1x8x128xf32> to vector<8x128xf32>
    %42 = arith.subf %39, %41 : vector<8x128xf32>
    %43 = math.absf %42 : vector<8x128xf32>
    %44 = arith.addf %36, %43 : vector<8x128xf32>
    %45 = vector.extract_strided_slice %3 {offsets = [0, 0, 0], sizes = [1, 8, 128], strides = [1, 1, 1]} : vector<3x8x128xf32> to vector<1x8x128xf32>
    %46 = vector.shape_cast %45 : vector<1x8x128xf32> to vector<8x128xf32>
    %47 = arith.mulf %46, %5 : vector<8x128xf32>
    %48 = vector.extract_strided_slice %9 {offsets = [0, 0, 0], sizes = [1, 8, 128], strides = [1, 1, 1]} : vector<3x8x128xf32> to vector<1x8x128xf32>
    %49 = vector.shape_cast %48 : vector<1x8x128xf32> to vector<8x128xf32>
    %50 = arith.subf %47, %49 : vector<8x128xf32>
    %51 = math.absf %50 : vector<8x128xf32>
    %52 = vector.extract_strided_slice %1 {offsets = [0, 0, 0], sizes = [1, 8, 128], strides = [1, 1, 1]} : vector<3x8x128xf32> to vector<1x8x128xf32>
    %53 = vector.shape_cast %52 : vector<1x8x128xf32> to vector<8x128xf32>
    %54 = arith.mulf %53, %7 : vector<8x128xf32>
    %55 = vector.extract_strided_slice %11 {offsets = [0, 0, 0], sizes = [1, 8, 128], strides = [1, 1, 1]} : vector<3x8x128xf32> to vector<1x8x128xf32>
    %56 = vector.shape_cast %55 : vector<1x8x128xf32> to vector<8x128xf32>
    %57 = arith.subf %54, %56 : vector<8x128xf32>
    %58 = math.absf %57 : vector<8x128xf32>
    %59 = arith.addf %51, %58 : vector<8x128xf32>
    %cst = arith.constant 1.000000e-03 : f32
    %60 = vector.broadcast %cst : f32 to vector<8x128xf32>
    %61 = arith.mulf %60, %59 : vector<8x128xf32>
    %62 = arith.addf %44, %61 : vector<8x128xf32>
    %63 = vector.extract_strided_slice %1 {offsets = [0, 0, 0], sizes = [1, 8, 128], strides = [1, 1, 1]} : vector<3x8x128xf32> to vector<1x8x128xf32>
    %64 = vector.shape_cast %63 : vector<1x8x128xf32> to vector<8x128xf32>
    %65 = vector.extract_strided_slice %3 {offsets = [0, 0, 0], sizes = [1, 8, 128], strides = [1, 1, 1]} : vector<3x8x128xf32> to vector<1x8x128xf32>
    %66 = vector.shape_cast %65 : vector<1x8x128xf32> to vector<8x128xf32>
    %67 = arith.subf %64, %66 : vector<8x128xf32>
    %68 = math.absf %67 : vector<8x128xf32>
    %cst_23 = arith.constant 0.00999999977 : f32
    %69 = vector.broadcast %cst_23 : f32 to vector<8x128xf32>
    %70 = arith.mulf %69, %68 : vector<8x128xf32>
    %71 = arith.addf %62, %70 : vector<8x128xf32>
    %72 = vector.extract_strided_slice %1 {offsets = [1, 0, 0], sizes = [1, 8, 128], strides = [1, 1, 1]} : vector<3x8x128xf32> to vector<1x8x128xf32>
    %73 = vector.shape_cast %72 : vector<1x8x128xf32> to vector<8x128xf32>
    %74 = arith.mulf %73, %5 : vector<8x128xf32>
    %75 = vector.extract_strided_slice %9 {offsets = [1, 0, 0], sizes = [1, 8, 128], strides = [1, 1, 1]} : vector<3x8x128xf32> to vector<1x8x128xf32>
    %76 = vector.shape_cast %75 : vector<1x8x128xf32> to vector<8x128xf32>
    %77 = arith.subf %74, %76 : vector<8x128xf32>
    %78 = math.absf %77 : vector<8x128xf32>
    %79 = vector.extract_strided_slice %3 {offsets = [1, 0, 0], sizes = [1, 8, 128], strides = [1, 1, 1]} : vector<3x8x128xf32> to vector<1x8x128xf32>
    %80 = vector.shape_cast %79 : vector<1x8x128xf32> to vector<8x128xf32>
    %81 = arith.mulf %80, %7 : vector<8x128xf32>
    %82 = vector.extract_strided_slice %11 {offsets = [1, 0, 0], sizes = [1, 8, 128], strides = [1, 1, 1]} : vector<3x8x128xf32> to vector<1x8x128xf32>
    %83 = vector.shape_cast %82 : vector<1x8x128xf32> to vector<8x128xf32>
    %84 = arith.subf %81, %83 : vector<8x128xf32>
    %85 = math.absf %84 : vector<8x128xf32>
    %86 = arith.addf %78, %85 : vector<8x128xf32>
    %87 = vector.extract_strided_slice %3 {offsets = [1, 0, 0], sizes = [1, 8, 128], strides = [1, 1, 1]} : vector<3x8x128xf32> to vector<1x8x128xf32>
    %88 = vector.shape_cast %87 : vector<1x8x128xf32> to vector<8x128xf32>
    %89 = arith.mulf %88, %5 : vector<8x128xf32>
    %90 = vector.extract_strided_slice %9 {offsets = [1, 0, 0], sizes = [1, 8, 128], strides = [1, 1, 1]} : vector<3x8x128xf32> to vector<1x8x128xf32>
    %91 = vector.shape_cast %90 : vector<1x8x128xf32> to vector<8x128xf32>
    %92 = arith.subf %89, %91 : vector<8x128xf32>
    %93 = math.absf %92 : vector<8x128xf32>
    %94 = vector.extract_strided_slice %1 {offsets = [1, 0, 0], sizes = [1, 8, 128], strides = [1, 1, 1]} : vector<3x8x128xf32> to vector<1x8x128xf32>
    %95 = vector.shape_cast %94 : vector<1x8x128xf32> to vector<8x128xf32>
    %96 = arith.mulf %95, %7 : vector<8x128xf32>
    %97 = vector.extract_strided_slice %11 {offsets = [1, 0, 0], sizes = [1, 8, 128], strides = [1, 1, 1]} : vector<3x8x128xf32> to vector<1x8x128xf32>
    %98 = vector.shape_cast %97 : vector<1x8x128xf32> to vector<8x128xf32>
    %99 = arith.subf %96, %98 : vector<8x128xf32>
    %100 = math.absf %99 : vector<8x128xf32>
    %101 = arith.addf %93, %100 : vector<8x128xf32>
    %cst_24 = arith.constant 1.000000e-03 : f32
    %102 = vector.broadcast %cst_24 : f32 to vector<8x128xf32>
    %103 = arith.mulf %102, %101 : vector<8x128xf32>
    %104 = arith.addf %86, %103 : vector<8x128xf32>
    %105 = vector.extract_strided_slice %1 {offsets = [1, 0, 0], sizes = [1, 8, 128], strides = [1, 1, 1]} : vector<3x8x128xf32> to vector<1x8x128xf32>
    %106 = vector.shape_cast %105 : vector<1x8x128xf32> to vector<8x128xf32>
    %107 = vector.extract_strided_slice %3 {offsets = [1, 0, 0], sizes = [1, 8, 128], strides = [1, 1, 1]} : vector<3x8x128xf32> to vector<1x8x128xf32>
    %108 = vector.shape_cast %107 : vector<1x8x128xf32> to vector<8x128xf32>
    %109 = arith.subf %106, %108 : vector<8x128xf32>
    %110 = math.absf %109 : vector<8x128xf32>
    %cst_25 = arith.constant 0.00999999977 : f32
    %111 = vector.broadcast %cst_25 : f32 to vector<8x128xf32>
    %112 = arith.mulf %111, %110 : vector<8x128xf32>
    %113 = arith.addf %104, %112 : vector<8x128xf32>
    %114 = arith.addf %71, %113 : vector<8x128xf32>
    %115 = vector.extract_strided_slice %1 {offsets = [2, 0, 0], sizes = [1, 8, 128], strides = [1, 1, 1]} : vector<3x8x128xf32> to vector<1x8x128xf32>
    %116 = vector.shape_cast %115 : vector<1x8x128xf32> to vector<8x128xf32>
    %117 = arith.mulf %116, %5 : vector<8x128xf32>
    %118 = vector.extract_strided_slice %9 {offsets = [2, 0, 0], sizes = [1, 8, 128], strides = [1, 1, 1]} : vector<3x8x128xf32> to vector<1x8x128xf32>
    %119 = vector.shape_cast %118 : vector<1x8x128xf32> to vector<8x128xf32>
    %120 = arith.subf %117, %119 : vector<8x128xf32>
    %121 = math.absf %120 : vector<8x128xf32>
    %122 = vector.extract_strided_slice %3 {offsets = [2, 0, 0], sizes = [1, 8, 128], strides = [1, 1, 1]} : vector<3x8x128xf32> to vector<1x8x128xf32>
    %123 = vector.shape_cast %122 : vector<1x8x128xf32> to vector<8x128xf32>
    %124 = arith.mulf %123, %7 : vector<8x128xf32>
    %125 = vector.extract_strided_slice %11 {offsets = [2, 0, 0], sizes = [1, 8, 128], strides = [1, 1, 1]} : vector<3x8x128xf32> to vector<1x8x128xf32>
    %126 = vector.shape_cast %125 : vector<1x8x128xf32> to vector<8x128xf32>
    %127 = arith.subf %124, %126 : vector<8x128xf32>
    %128 = math.absf %127 : vector<8x128xf32>
    %129 = arith.addf %121, %128 : vector<8x128xf32>
    %130 = vector.extract_strided_slice %3 {offsets = [2, 0, 0], sizes = [1, 8, 128], strides = [1, 1, 1]} : vector<3x8x128xf32> to vector<1x8x128xf32>
    %131 = vector.shape_cast %130 : vector<1x8x128xf32> to vector<8x128xf32>
    %132 = arith.mulf %131, %5 : vector<8x128xf32>
    %133 = vector.extract_strided_slice %9 {offsets = [2, 0, 0], sizes = [1, 8, 128], strides = [1, 1, 1]} : vector<3x8x128xf32> to vector<1x8x128xf32>
    %134 = vector.shape_cast %133 : vector<1x8x128xf32> to vector<8x128xf32>
    %135 = arith.subf %132, %134 : vector<8x128xf32>
    %136 = math.absf %135 : vector<8x128xf32>
    %137 = vector.extract_strided_slice %1 {offsets = [2, 0, 0], sizes = [1, 8, 128], strides = [1, 1, 1]} : vector<3x8x128xf32> to vector<1x8x128xf32>
    %138 = vector.shape_cast %137 : vector<1x8x128xf32> to vector<8x128xf32>
    %139 = arith.mulf %138, %7 : vector<8x128xf32>
    %140 = vector.extract_strided_slice %11 {offsets = [2, 0, 0], sizes = [1, 8, 128], strides = [1, 1, 1]} : vector<3x8x128xf32> to vector<1x8x128xf32>
    %141 = vector.shape_cast %140 : vector<1x8x128xf32> to vector<8x128xf32>
    %142 = arith.subf %139, %141 : vector<8x128xf32>
    %143 = math.absf %142 : vector<8x128xf32>
    %144 = arith.addf %136, %143 : vector<8x128xf32>
    %cst_26 = arith.constant 1.000000e-03 : f32
    %145 = vector.broadcast %cst_26 : f32 to vector<8x128xf32>
    %146 = arith.mulf %145, %144 : vector<8x128xf32>
    %147 = arith.addf %129, %146 : vector<8x128xf32>
    %148 = vector.extract_strided_slice %1 {offsets = [2, 0, 0], sizes = [1, 8, 128], strides = [1, 1, 1]} : vector<3x8x128xf32> to vector<1x8x128xf32>
    %149 = vector.shape_cast %148 : vector<1x8x128xf32> to vector<8x128xf32>
    %150 = vector.extract_strided_slice %3 {offsets = [2, 0, 0], sizes = [1, 8, 128], strides = [1, 1, 1]} : vector<3x8x128xf32> to vector<1x8x128xf32>
    %151 = vector.shape_cast %150 : vector<1x8x128xf32> to vector<8x128xf32>
    %152 = arith.subf %149, %151 : vector<8x128xf32>
    %153 = math.absf %152 : vector<8x128xf32>
    %cst_27 = arith.constant 0.00999999977 : f32
    %154 = vector.broadcast %cst_27 : f32 to vector<8x128xf32>
    %155 = arith.mulf %154, %153 : vector<8x128xf32>
    %156 = arith.addf %147, %155 : vector<8x128xf32>
    %157 = arith.addf %114, %156 : vector<8x128xf32>
    %c0_i32_28 = arith.constant 0 : i32
    %158 = arith.cmpi sgt, %arg1, %c0_i32_28 : i32
    %159 = arith.extui %158 : i1 to i32
    %160 = arith.sitofp %159 : i32 to f32
    %c0_29 = arith.constant 0 : index
    %c7 = arith.constant 7 : index
    %c0_30 = arith.constant 0 : index
    %161 = vector.load %arg6[%c0_29, %c7, %c0_30] : memref<1x8x128xf32, #tpu.memory_space<vmem>>, vector<1x1x128xf32>
    %162 = vector.shape_cast %161 : vector<1x1x128xf32> to vector<1x128xf32>
    %163 = vector.broadcast %160 : f32 to vector<1x128xf32>
    %164 = arith.mulf %162, %163 : vector<1x128xf32>
    %c0_31 = arith.constant 0 : index
    %c7_32 = arith.constant 7 : index
    %c0_33 = arith.constant 0 : index
    %165 = vector.load %arg11[%c0_31, %c7_32, %c0_33] : memref<1x8x128xf32, #tpu.memory_space<vmem>>, vector<1x1x128xf32>
    %166 = vector.shape_cast %165 : vector<1x1x128xf32> to vector<1x128xf32>
    %167 = vector.broadcast %160 : f32 to vector<1x128xf32>
    %168 = arith.mulf %166, %167 : vector<1x128xf32>
    %c0_34 = arith.constant 0 : index
    %c0_35 = arith.constant 0 : index
    %c0_36 = arith.constant 0 : index
    %c0_37 = arith.constant 0 : index
    %169 = vector.load %arg3[%c0_34, %c0_35, %c0_36, %c0_37] : memref<1x3x8x128xf32, #tpu.memory_space<vmem>>, vector<1x3x8x128xf32>
    %170 = vector.shape_cast %169 : vector<1x3x8x128xf32> to vector<3x8x128xf32>
    %c0_38 = arith.constant 0 : index
    %c0_39 = arith.constant 0 : index
    %c0_40 = arith.constant 0 : index
    %c0_41 = arith.constant 0 : index
    %171 = vector.load %arg4[%c0_38, %c0_39, %c0_40, %c0_41] : memref<1x3x8x128xf32, #tpu.memory_space<vmem>>, vector<1x3x8x128xf32>
    %172 = vector.shape_cast %171 : vector<1x3x8x128xf32> to vector<3x8x128xf32>
    %173 = vector.extract_strided_slice %170 {offsets = [0, 0, 0], sizes = [1, 8, 128], strides = [1, 1, 1]} : vector<3x8x128xf32> to vector<1x8x128xf32>
    %174 = vector.shape_cast %173 : vector<1x8x128xf32> to vector<8x128xf32>
    %cst_42 = arith.constant 2.989000e-01 : f32
    %175 = vector.broadcast %cst_42 : f32 to vector<8x128xf32>
    %176 = arith.mulf %175, %174 : vector<8x128xf32>
    %177 = vector.extract_strided_slice %170 {offsets = [1, 0, 0], sizes = [1, 8, 128], strides = [1, 1, 1]} : vector<3x8x128xf32> to vector<1x8x128xf32>
    %178 = vector.shape_cast %177 : vector<1x8x128xf32> to vector<8x128xf32>
    %cst_43 = arith.constant 5.870000e-01 : f32
    %179 = vector.broadcast %cst_43 : f32 to vector<8x128xf32>
    %180 = arith.mulf %179, %178 : vector<8x128xf32>
    %181 = arith.addf %176, %180 : vector<8x128xf32>
    %182 = vector.extract_strided_slice %170 {offsets = [2, 0, 0], sizes = [1, 8, 128], strides = [1, 1, 1]} : vector<3x8x128xf32> to vector<1x8x128xf32>
    %183 = vector.shape_cast %182 : vector<1x8x128xf32> to vector<8x128xf32>
    %cst_44 = arith.constant 1.140000e-01 : f32
    %184 = vector.broadcast %cst_44 : f32 to vector<8x128xf32>
    %185 = arith.mulf %184, %183 : vector<8x128xf32>
    %186 = arith.addf %181, %185 : vector<8x128xf32>
    %187 = vector.extract_strided_slice %1 {offsets = [0, 0, 0], sizes = [1, 8, 128], strides = [1, 1, 1]} : vector<3x8x128xf32> to vector<1x8x128xf32>
    %188 = vector.shape_cast %187 : vector<1x8x128xf32> to vector<8x128xf32>
    %cst_45 = arith.constant 2.989000e-01 : f32
    %189 = vector.broadcast %cst_45 : f32 to vector<8x128xf32>
    %190 = arith.mulf %189, %188 : vector<8x128xf32>
    %191 = vector.extract_strided_slice %1 {offsets = [1, 0, 0], sizes = [1, 8, 128], strides = [1, 1, 1]} : vector<3x8x128xf32> to vector<1x8x128xf32>
    %192 = vector.shape_cast %191 : vector<1x8x128xf32> to vector<8x128xf32>
    %cst_46 = arith.constant 5.870000e-01 : f32
    %193 = vector.broadcast %cst_46 : f32 to vector<8x128xf32>
    %194 = arith.mulf %193, %192 : vector<8x128xf32>
    %195 = arith.addf %190, %194 : vector<8x128xf32>
    %196 = vector.extract_strided_slice %1 {offsets = [2, 0, 0], sizes = [1, 8, 128], strides = [1, 1, 1]} : vector<3x8x128xf32> to vector<1x8x128xf32>
    %197 = vector.shape_cast %196 : vector<1x8x128xf32> to vector<8x128xf32>
    %cst_47 = arith.constant 1.140000e-01 : f32
    %198 = vector.broadcast %cst_47 : f32 to vector<8x128xf32>
    %199 = arith.mulf %198, %197 : vector<8x128xf32>
    %200 = arith.addf %195, %199 : vector<8x128xf32>
    %201 = vector.extract_strided_slice %172 {offsets = [0, 0, 0], sizes = [1, 8, 128], strides = [1, 1, 1]} : vector<3x8x128xf32> to vector<1x8x128xf32>
    %202 = vector.shape_cast %201 : vector<1x8x128xf32> to vector<8x128xf32>
    %cst_48 = arith.constant 2.989000e-01 : f32
    %203 = vector.broadcast %cst_48 : f32 to vector<8x128xf32>
    %204 = arith.mulf %203, %202 : vector<8x128xf32>
    %205 = vector.extract_strided_slice %172 {offsets = [1, 0, 0], sizes = [1, 8, 128], strides = [1, 1, 1]} : vector<3x8x128xf32> to vector<1x8x128xf32>
    %206 = vector.shape_cast %205 : vector<1x8x128xf32> to vector<8x128xf32>
    %cst_49 = arith.constant 5.870000e-01 : f32
    %207 = vector.broadcast %cst_49 : f32 to vector<8x128xf32>
    %208 = arith.mulf %207, %206 : vector<8x128xf32>
    %209 = arith.addf %204, %208 : vector<8x128xf32>
    %210 = vector.extract_strided_slice %172 {offsets = [2, 0, 0], sizes = [1, 8, 128], strides = [1, 1, 1]} : vector<3x8x128xf32> to vector<1x8x128xf32>
    %211 = vector.shape_cast %210 : vector<1x8x128xf32> to vector<8x128xf32>
    %cst_50 = arith.constant 1.140000e-01 : f32
    %212 = vector.broadcast %cst_50 : f32 to vector<8x128xf32>
    %213 = arith.mulf %212, %211 : vector<8x128xf32>
    %214 = arith.addf %209, %213 : vector<8x128xf32>
    %215 = tpu.concatenate %186, %200, %214 in 0 : vector<8x128xf32>, vector<8x128xf32>, vector<8x128xf32> -> vector<24x128xf32>
    %cst_51 = arith.constant 0.000000e+00 : f32
    %216 = vector.shape_cast %26 : vector<24x1xi1> to vector<24x1xi1>
    %217 = vector.broadcast %216 : vector<24x1xi1> to vector<24x128xi1>
    %218 = vector.broadcast %cst_51 : f32 to vector<24x128xf32>
    %219 = arith.select %217, %215, %218 : vector<24x128xi1>, vector<24x128xf32>
    %c1_i32_52 = arith.constant 1 : i32
    %220 = tpu.dynamic_rotate %219 by %c1_i32_52 dim 1 : vector<24x128xf32>, i32 -> vector<24x128xf32>
    %cst_53 = arith.constant 0.000000e+00 : f32
    %221 = vector.shape_cast %14 : vector<1x128xi1> to vector<1x128xi1>
    %222 = vector.broadcast %221 : vector<1x128xi1> to vector<24x128xi1>
    %223 = vector.broadcast %cst_53 : f32 to vector<24x128xf32>
    %224 = arith.select %222, %220, %223 : vector<24x128xi1>, vector<24x128xf32>
    %225 = arith.subf %219, %224 : vector<24x128xf32>
    %226 = math.absf %225 : vector<24x128xf32>
    %c1_i32_54 = arith.constant 1 : i32
    %227 = tpu.dynamic_rotate %219 by %c1_i32_54 dim 0 : vector<24x128xf32>, i32 -> vector<24x128xf32>
    %228 = arith.subf %219, %227 : vector<24x128xf32>
    %229 = math.absf %228 : vector<24x128xf32>
    %cst_55 = arith.constant 0.000000e+00 : f32
    %230 = vector.shape_cast %26 : vector<24x1xi1> to vector<24x1xi1>
    %231 = vector.broadcast %230 : vector<24x1xi1> to vector<24x128xi1>
    %232 = vector.broadcast %cst_55 : f32 to vector<24x128xf32>
    %233 = arith.select %231, %229, %232 : vector<24x128xi1>, vector<24x128xf32>
    %c1_i32_56 = arith.constant 1 : i32
    %234 = tpu.dynamic_rotate %226 by %c1_i32_56 dim 0 : vector<24x128xf32>, i32 -> vector<24x128xf32>
    %235 = arith.addf %226, %234 : vector<24x128xf32>
    %c23_i32 = arith.constant 23 : i32
    %236 = tpu.dynamic_rotate %226 by %c23_i32 dim 0 : vector<24x128xf32>, i32 -> vector<24x128xf32>
    %237 = arith.addf %235, %236 : vector<24x128xf32>
    %c1_i32_57 = arith.constant 1 : i32
    %238 = tpu.dynamic_rotate %237 by %c1_i32_57 dim 1 : vector<24x128xf32>, i32 -> vector<24x128xf32>
    %cst_58 = arith.constant 0.000000e+00 : f32
    %239 = vector.shape_cast %14 : vector<1x128xi1> to vector<1x128xi1>
    %240 = vector.broadcast %239 : vector<1x128xi1> to vector<24x128xi1>
    %241 = vector.broadcast %cst_58 : f32 to vector<24x128xf32>
    %242 = arith.select %240, %238, %241 : vector<24x128xi1>, vector<24x128xf32>
    %243 = arith.addf %237, %242 : vector<24x128xf32>
    %c127_i32_59 = arith.constant 127 : i32
    %244 = tpu.dynamic_rotate %237 by %c127_i32_59 dim 1 : vector<24x128xf32>, i32 -> vector<24x128xf32>
    %cst_60 = arith.constant 0.000000e+00 : f32
    %245 = vector.shape_cast %16 : vector<1x128xi1> to vector<1x128xi1>
    %246 = vector.broadcast %245 : vector<1x128xi1> to vector<24x128xi1>
    %247 = vector.broadcast %cst_60 : f32 to vector<24x128xf32>
    %248 = arith.select %246, %244, %247 : vector<24x128xi1>, vector<24x128xf32>
    %249 = arith.addf %243, %248 : vector<24x128xf32>
    %250 = vector.extract_strided_slice %249 {offsets = [8, 0], sizes = [8, 128], strides = [1, 1]} : vector<24x128xf32> to vector<8x128xf32>
    %c1_i32_61 = arith.constant 1 : i32
    %251 = tpu.dynamic_rotate %233 by %c1_i32_61 dim 0 : vector<24x128xf32>, i32 -> vector<24x128xf32>
    %252 = arith.addf %233, %251 : vector<24x128xf32>
    %c23_i32_62 = arith.constant 23 : i32
    %253 = tpu.dynamic_rotate %233 by %c23_i32_62 dim 0 : vector<24x128xf32>, i32 -> vector<24x128xf32>
    %254 = arith.addf %252, %253 : vector<24x128xf32>
    %c1_i32_63 = arith.constant 1 : i32
    %255 = tpu.dynamic_rotate %254 by %c1_i32_63 dim 1 : vector<24x128xf32>, i32 -> vector<24x128xf32>
    %cst_64 = arith.constant 0.000000e+00 : f32
    %256 = vector.shape_cast %14 : vector<1x128xi1> to vector<1x128xi1>
    %257 = vector.broadcast %256 : vector<1x128xi1> to vector<24x128xi1>
    %258 = vector.broadcast %cst_64 : f32 to vector<24x128xf32>
    %259 = arith.select %257, %255, %258 : vector<24x128xi1>, vector<24x128xf32>
    %260 = arith.addf %254, %259 : vector<24x128xf32>
    %c127_i32_65 = arith.constant 127 : i32
    %261 = tpu.dynamic_rotate %254 by %c127_i32_65 dim 1 : vector<24x128xf32>, i32 -> vector<24x128xf32>
    %cst_66 = arith.constant 0.000000e+00 : f32
    %262 = vector.shape_cast %16 : vector<1x128xi1> to vector<1x128xi1>
    %263 = vector.broadcast %262 : vector<1x128xi1> to vector<24x128xi1>
    %264 = vector.broadcast %cst_66 : f32 to vector<24x128xf32>
    %265 = arith.select %263, %261, %264 : vector<24x128xi1>, vector<24x128xf32>
    %266 = arith.addf %260, %265 : vector<24x128xf32>
    %267 = vector.extract_strided_slice %266 {offsets = [8, 0], sizes = [8, 128], strides = [1, 1]} : vector<24x128xf32> to vector<8x128xf32>
    %c1_i32_67 = arith.constant 1 : i32
    %268 = tpu.dynamic_rotate %5 by %c1_i32_67 dim 1 : vector<8x128xf32>, i32 -> vector<8x128xf32>
    %cst_68 = arith.constant 0.000000e+00 : f32
    %269 = vector.shape_cast %14 : vector<1x128xi1> to vector<1x128xi1>
    %270 = vector.broadcast %269 : vector<1x128xi1> to vector<8x128xi1>
    %271 = vector.broadcast %cst_68 : f32 to vector<8x128xf32>
    %272 = arith.select %270, %268, %271 : vector<8x128xi1>, vector<8x128xf32>
    %273 = arith.subf %5, %272 : vector<8x128xf32>
    %274 = math.absf %273 : vector<8x128xf32>
    %c1_i32_69 = arith.constant 1 : i32
    %275 = tpu.dynamic_rotate %5 by %c1_i32_69 dim 0 : vector<8x128xf32>, i32 -> vector<8x128xf32>
    %276 = vector.shape_cast %29 : vector<8x1xi1> to vector<8x1xi1>
    %277 = vector.broadcast %276 : vector<8x1xi1> to vector<8x128xi1>
    %278 = vector.shape_cast %164 : vector<1x128xf32> to vector<1x128xf32>
    %279 = vector.broadcast %278 : vector<1x128xf32> to vector<8x128xf32>
    %280 = arith.select %277, %279, %275 : vector<8x128xi1>, vector<8x128xf32>
    %281 = arith.subf %5, %280 : vector<8x128xf32>
    %282 = math.absf %281 : vector<8x128xf32>
    %cst_70 = arith.constant -1.11111116 : f32
    %283 = vector.broadcast %cst_70 : f32 to vector<8x128xf32>
    %284 = arith.mulf %283, %250 : vector<8x128xf32>
    %285 = math.exp %284 : vector<8x128xf32>
    %286 = arith.mulf %274, %285 : vector<8x128xf32>
    %cst_71 = arith.constant -1.11111116 : f32
    %287 = vector.broadcast %cst_71 : f32 to vector<8x128xf32>
    %288 = arith.mulf %287, %267 : vector<8x128xf32>
    %289 = math.exp %288 : vector<8x128xf32>
    %290 = arith.mulf %282, %289 : vector<8x128xf32>
    %291 = arith.addf %286, %290 : vector<8x128xf32>
    %c0_72 = arith.constant 0 : index
    %c0_73 = arith.constant 0 : index
    %c0_74 = arith.constant 0 : index
    %c0_75 = arith.constant 0 : index
    %292 = vector.load %arg8[%c0_72, %c0_73, %c0_74, %c0_75] : memref<1x3x8x128xf32, #tpu.memory_space<vmem>>, vector<1x3x8x128xf32>
    %293 = vector.shape_cast %292 : vector<1x3x8x128xf32> to vector<3x8x128xf32>
    %c0_76 = arith.constant 0 : index
    %c0_77 = arith.constant 0 : index
    %c0_78 = arith.constant 0 : index
    %c0_79 = arith.constant 0 : index
    %294 = vector.load %arg9[%c0_76, %c0_77, %c0_78, %c0_79] : memref<1x3x8x128xf32, #tpu.memory_space<vmem>>, vector<1x3x8x128xf32>
    %295 = vector.shape_cast %294 : vector<1x3x8x128xf32> to vector<3x8x128xf32>
    %296 = vector.extract_strided_slice %293 {offsets = [0, 0, 0], sizes = [1, 8, 128], strides = [1, 1, 1]} : vector<3x8x128xf32> to vector<1x8x128xf32>
    %297 = vector.shape_cast %296 : vector<1x8x128xf32> to vector<8x128xf32>
    %cst_80 = arith.constant 2.989000e-01 : f32
    %298 = vector.broadcast %cst_80 : f32 to vector<8x128xf32>
    %299 = arith.mulf %298, %297 : vector<8x128xf32>
    %300 = vector.extract_strided_slice %293 {offsets = [1, 0, 0], sizes = [1, 8, 128], strides = [1, 1, 1]} : vector<3x8x128xf32> to vector<1x8x128xf32>
    %301 = vector.shape_cast %300 : vector<1x8x128xf32> to vector<8x128xf32>
    %cst_81 = arith.constant 5.870000e-01 : f32
    %302 = vector.broadcast %cst_81 : f32 to vector<8x128xf32>
    %303 = arith.mulf %302, %301 : vector<8x128xf32>
    %304 = arith.addf %299, %303 : vector<8x128xf32>
    %305 = vector.extract_strided_slice %293 {offsets = [2, 0, 0], sizes = [1, 8, 128], strides = [1, 1, 1]} : vector<3x8x128xf32> to vector<1x8x128xf32>
    %306 = vector.shape_cast %305 : vector<1x8x128xf32> to vector<8x128xf32>
    %cst_82 = arith.constant 1.140000e-01 : f32
    %307 = vector.broadcast %cst_82 : f32 to vector<8x128xf32>
    %308 = arith.mulf %307, %306 : vector<8x128xf32>
    %309 = arith.addf %304, %308 : vector<8x128xf32>
    %310 = vector.extract_strided_slice %3 {offsets = [0, 0, 0], sizes = [1, 8, 128], strides = [1, 1, 1]} : vector<3x8x128xf32> to vector<1x8x128xf32>
    %311 = vector.shape_cast %310 : vector<1x8x128xf32> to vector<8x128xf32>
    %cst_83 = arith.constant 2.989000e-01 : f32
    %312 = vector.broadcast %cst_83 : f32 to vector<8x128xf32>
    %313 = arith.mulf %312, %311 : vector<8x128xf32>
    %314 = vector.extract_strided_slice %3 {offsets = [1, 0, 0], sizes = [1, 8, 128], strides = [1, 1, 1]} : vector<3x8x128xf32> to vector<1x8x128xf32>
    %315 = vector.shape_cast %314 : vector<1x8x128xf32> to vector<8x128xf32>
    %cst_84 = arith.constant 5.870000e-01 : f32
    %316 = vector.broadcast %cst_84 : f32 to vector<8x128xf32>
    %317 = arith.mulf %316, %315 : vector<8x128xf32>
    %318 = arith.addf %313, %317 : vector<8x128xf32>
    %319 = vector.extract_strided_slice %3 {offsets = [2, 0, 0], sizes = [1, 8, 128], strides = [1, 1, 1]} : vector<3x8x128xf32> to vector<1x8x128xf32>
    %320 = vector.shape_cast %319 : vector<1x8x128xf32> to vector<8x128xf32>
    %cst_85 = arith.constant 1.140000e-01 : f32
    %321 = vector.broadcast %cst_85 : f32 to vector<8x128xf32>
    %322 = arith.mulf %321, %320 : vector<8x128xf32>
    %323 = arith.addf %318, %322 : vector<8x128xf32>
    %324 = vector.extract_strided_slice %295 {offsets = [0, 0, 0], sizes = [1, 8, 128], strides = [1, 1, 1]} : vector<3x8x128xf32> to vector<1x8x128xf32>
    %325 = vector.shape_cast %324 : vector<1x8x128xf32> to vector<8x128xf32>
    %cst_86 = arith.constant 2.989000e-01 : f32
    %326 = vector.broadcast %cst_86 : f32 to vector<8x128xf32>
    %327 = arith.mulf %326, %325 : vector<8x128xf32>
    %328 = vector.extract_strided_slice %295 {offsets = [1, 0, 0], sizes = [1, 8, 128], strides = [1, 1, 1]} : vector<3x8x128xf32> to vector<1x8x128xf32>
    %329 = vector.shape_cast %328 : vector<1x8x128xf32> to vector<8x128xf32>
    %cst_87 = arith.constant 5.870000e-01 : f32
    %330 = vector.broadcast %cst_87 : f32 to vector<8x128xf32>
    %331 = arith.mulf %330, %329 : vector<8x128xf32>
    %332 = arith.addf %327, %331 : vector<8x128xf32>
    %333 = vector.extract_strided_slice %295 {offsets = [2, 0, 0], sizes = [1, 8, 128], strides = [1, 1, 1]} : vector<3x8x128xf32> to vector<1x8x128xf32>
    %334 = vector.shape_cast %333 : vector<1x8x128xf32> to vector<8x128xf32>
    %cst_88 = arith.constant 1.140000e-01 : f32
    %335 = vector.broadcast %cst_88 : f32 to vector<8x128xf32>
    %336 = arith.mulf %335, %334 : vector<8x128xf32>
    %337 = arith.addf %332, %336 : vector<8x128xf32>
    %338 = tpu.concatenate %309, %323, %337 in 0 : vector<8x128xf32>, vector<8x128xf32>, vector<8x128xf32> -> vector<24x128xf32>
    %cst_89 = arith.constant 0.000000e+00 : f32
    %339 = vector.shape_cast %26 : vector<24x1xi1> to vector<24x1xi1>
    %340 = vector.broadcast %339 : vector<24x1xi1> to vector<24x128xi1>
    %341 = vector.broadcast %cst_89 : f32 to vector<24x128xf32>
    %342 = arith.select %340, %338, %341 : vector<24x128xi1>, vector<24x128xf32>
    %c1_i32_90 = arith.constant 1 : i32
    %343 = tpu.dynamic_rotate %342 by %c1_i32_90 dim 1 : vector<24x128xf32>, i32 -> vector<24x128xf32>
    %cst_91 = arith.constant 0.000000e+00 : f32
    %344 = vector.shape_cast %14 : vector<1x128xi1> to vector<1x128xi1>
    %345 = vector.broadcast %344 : vector<1x128xi1> to vector<24x128xi1>
    %346 = vector.broadcast %cst_91 : f32 to vector<24x128xf32>
    %347 = arith.select %345, %343, %346 : vector<24x128xi1>, vector<24x128xf32>
    %348 = arith.subf %342, %347 : vector<24x128xf32>
    %349 = math.absf %348 : vector<24x128xf32>
    %c1_i32_92 = arith.constant 1 : i32
    %350 = tpu.dynamic_rotate %342 by %c1_i32_92 dim 0 : vector<24x128xf32>, i32 -> vector<24x128xf32>
    %351 = arith.subf %342, %350 : vector<24x128xf32>
    %352 = math.absf %351 : vector<24x128xf32>
    %cst_93 = arith.constant 0.000000e+00 : f32
    %353 = vector.shape_cast %26 : vector<24x1xi1> to vector<24x1xi1>
    %354 = vector.broadcast %353 : vector<24x1xi1> to vector<24x128xi1>
    %355 = vector.broadcast %cst_93 : f32 to vector<24x128xf32>
    %356 = arith.select %354, %352, %355 : vector<24x128xi1>, vector<24x128xf32>
    %c1_i32_94 = arith.constant 1 : i32
    %357 = tpu.dynamic_rotate %349 by %c1_i32_94 dim 0 : vector<24x128xf32>, i32 -> vector<24x128xf32>
    %358 = arith.addf %349, %357 : vector<24x128xf32>
    %c23_i32_95 = arith.constant 23 : i32
    %359 = tpu.dynamic_rotate %349 by %c23_i32_95 dim 0 : vector<24x128xf32>, i32 -> vector<24x128xf32>
    %360 = arith.addf %358, %359 : vector<24x128xf32>
    %c1_i32_96 = arith.constant 1 : i32
    %361 = tpu.dynamic_rotate %360 by %c1_i32_96 dim 1 : vector<24x128xf32>, i32 -> vector<24x128xf32>
    %cst_97 = arith.constant 0.000000e+00 : f32
    %362 = vector.shape_cast %14 : vector<1x128xi1> to vector<1x128xi1>
    %363 = vector.broadcast %362 : vector<1x128xi1> to vector<24x128xi1>
    %364 = vector.broadcast %cst_97 : f32 to vector<24x128xf32>
    %365 = arith.select %363, %361, %364 : vector<24x128xi1>, vector<24x128xf32>
    %366 = arith.addf %360, %365 : vector<24x128xf32>
    %c127_i32_98 = arith.constant 127 : i32
    %367 = tpu.dynamic_rotate %360 by %c127_i32_98 dim 1 : vector<24x128xf32>, i32 -> vector<24x128xf32>
    %cst_99 = arith.constant 0.000000e+00 : f32
    %368 = vector.shape_cast %16 : vector<1x128xi1> to vector<1x128xi1>
    %369 = vector.broadcast %368 : vector<1x128xi1> to vector<24x128xi1>
    %370 = vector.broadcast %cst_99 : f32 to vector<24x128xf32>
    %371 = arith.select %369, %367, %370 : vector<24x128xi1>, vector<24x128xf32>
    %372 = arith.addf %366, %371 : vector<24x128xf32>
    %373 = vector.extract_strided_slice %372 {offsets = [8, 0], sizes = [8, 128], strides = [1, 1]} : vector<24x128xf32> to vector<8x128xf32>
    %c1_i32_100 = arith.constant 1 : i32
    %374 = tpu.dynamic_rotate %356 by %c1_i32_100 dim 0 : vector<24x128xf32>, i32 -> vector<24x128xf32>
    %375 = arith.addf %356, %374 : vector<24x128xf32>
    %c23_i32_101 = arith.constant 23 : i32
    %376 = tpu.dynamic_rotate %356 by %c23_i32_101 dim 0 : vector<24x128xf32>, i32 -> vector<24x128xf32>
    %377 = arith.addf %375, %376 : vector<24x128xf32>
    %c1_i32_102 = arith.constant 1 : i32
    %378 = tpu.dynamic_rotate %377 by %c1_i32_102 dim 1 : vector<24x128xf32>, i32 -> vector<24x128xf32>
    %cst_103 = arith.constant 0.000000e+00 : f32
    %379 = vector.shape_cast %14 : vector<1x128xi1> to vector<1x128xi1>
    %380 = vector.broadcast %379 : vector<1x128xi1> to vector<24x128xi1>
    %381 = vector.broadcast %cst_103 : f32 to vector<24x128xf32>
    %382 = arith.select %380, %378, %381 : vector<24x128xi1>, vector<24x128xf32>
    %383 = arith.addf %377, %382 : vector<24x128xf32>
    %c127_i32_104 = arith.constant 127 : i32
    %384 = tpu.dynamic_rotate %377 by %c127_i32_104 dim 1 : vector<24x128xf32>, i32 -> vector<24x128xf32>
    %cst_105 = arith.constant 0.000000e+00 : f32
    %385 = vector.shape_cast %16 : vector<1x128xi1> to vector<1x128xi1>
    %386 = vector.broadcast %385 : vector<1x128xi1> to vector<24x128xi1>
    %387 = vector.broadcast %cst_105 : f32 to vector<24x128xf32>
    %388 = arith.select %386, %384, %387 : vector<24x128xi1>, vector<24x128xf32>
    %389 = arith.addf %383, %388 : vector<24x128xf32>
    %390 = vector.extract_strided_slice %389 {offsets = [8, 0], sizes = [8, 128], strides = [1, 1]} : vector<24x128xf32> to vector<8x128xf32>
    %c1_i32_106 = arith.constant 1 : i32
    %391 = tpu.dynamic_rotate %7 by %c1_i32_106 dim 1 : vector<8x128xf32>, i32 -> vector<8x128xf32>
    %cst_107 = arith.constant 0.000000e+00 : f32
    %392 = vector.shape_cast %14 : vector<1x128xi1> to vector<1x128xi1>
    %393 = vector.broadcast %392 : vector<1x128xi1> to vector<8x128xi1>
    %394 = vector.broadcast %cst_107 : f32 to vector<8x128xf32>
    %395 = arith.select %393, %391, %394 : vector<8x128xi1>, vector<8x128xf32>
    %396 = arith.subf %7, %395 : vector<8x128xf32>
    %397 = math.absf %396 : vector<8x128xf32>
    %c1_i32_108 = arith.constant 1 : i32
    %398 = tpu.dynamic_rotate %7 by %c1_i32_108 dim 0 : vector<8x128xf32>, i32 -> vector<8x128xf32>
    %399 = vector.shape_cast %29 : vector<8x1xi1> to vector<8x1xi1>
    %400 = vector.broadcast %399 : vector<8x1xi1> to vector<8x128xi1>
    %401 = vector.shape_cast %168 : vector<1x128xf32> to vector<1x128xf32>
    %402 = vector.broadcast %401 : vector<1x128xf32> to vector<8x128xf32>
    %403 = arith.select %400, %402, %398 : vector<8x128xi1>, vector<8x128xf32>
    %404 = arith.subf %7, %403 : vector<8x128xf32>
    %405 = math.absf %404 : vector<8x128xf32>
    %cst_109 = arith.constant -1.11111116 : f32
    %406 = vector.broadcast %cst_109 : f32 to vector<8x128xf32>
    %407 = arith.mulf %406, %373 : vector<8x128xf32>
    %408 = math.exp %407 : vector<8x128xf32>
    %409 = arith.mulf %397, %408 : vector<8x128xf32>
    %cst_110 = arith.constant -1.11111116 : f32
    %410 = vector.broadcast %cst_110 : f32 to vector<8x128xf32>
    %411 = arith.mulf %410, %390 : vector<8x128xf32>
    %412 = math.exp %411 : vector<8x128xf32>
    %413 = arith.mulf %405, %412 : vector<8x128xf32>
    %414 = arith.addf %409, %413 : vector<8x128xf32>
    %cst_111 = arith.constant 8.13802107E-5 : f32
    %415 = vector.broadcast %cst_111 : f32 to vector<8x128xf32>
    %416 = arith.mulf %415, %157 : vector<8x128xf32>
    %417 = arith.addf %291, %414 : vector<8x128xf32>
    %cst_112 = arith.constant 2.44140629E-5 : f32
    %418 = vector.broadcast %cst_112 : f32 to vector<8x128xf32>
    %419 = arith.mulf %418, %417 : vector<8x128xf32>
    %420 = arith.addf %416, %419 : vector<8x128xf32>
    %c0_113 = arith.constant 0 : index
    %c0_114 = arith.constant 0 : index
    %c0_115 = arith.constant 0 : index
    %c0_116 = arith.constant 0 : index
    %421 = vector.load %arg14[%c0_113, %c0_114, %c0_115, %c0_116] : memref<1x1x8x128xf32, #tpu.memory_space<vmem>>, vector<1x1x8x128xf32>
    %422 = vector.shape_cast %421 : vector<1x1x8x128xf32> to vector<8x128xf32>
    %423 = vector.shape_cast %420 : vector<8x128xf32> to vector<1x1x8x128xf32>
    tpu.vector_store %arg14[%c0_113, %c0_114, %c0_115, %c0_116], %423 {strides = array<i32>} : memref<1x1x8x128xf32, #tpu.memory_space<vmem>>, vector<1x1x8x128xf32>,
    return
  }
  func.func @transform_0(%arg0: i32, %arg1: i32) -> (i32, i32, i32, i32) {
    %c0_i32 = arith.constant 0 : i32
    %c0_i32_0 = arith.constant 0 : i32
    %c0_i32_1 = arith.constant 0 : i32
    return %arg0, %c0_i32, %arg1, %c0_i32_0 : i32, i32, i32, i32
  }
  func.func @transform_1(%arg0: i32, %arg1: i32) -> (i32, i32, i32, i32) {
    %c1_i32 = arith.constant 1 : i32
    %0 = arith.muli %arg1, %c1_i32 : i32
    %c1_i32_0 = arith.constant 1 : i32
    %1 = arith.subi %0, %c1_i32_0 : i32
    %c0_i32 = arith.constant 0 : i32
    %2 = arith.maxsi %1, %c0_i32 : i32
    %c0_i32_1 = arith.constant 0 : i32
    %c0_i32_2 = arith.constant 0 : i32
    %c0_i32_3 = arith.constant 0 : i32
    return %arg0, %c0_i32_1, %2, %c0_i32_2 : i32, i32, i32, i32
  }
  func.func @transform_2(%arg0: i32, %arg1: i32) -> (i32, i32, i32, i32) {
    %c1_i32 = arith.constant 1 : i32
    %0 = arith.addi %arg1, %c1_i32 : i32
    %c1_i32_0 = arith.constant 1 : i32
    %1 = arith.muli %0, %c1_i32_0 : i32
    %c1_i32_1 = arith.constant 1 : i32
    %2 = arith.minsi %1, %c1_i32_1 : i32
    %c0_i32 = arith.constant 0 : i32
    %c0_i32_2 = arith.constant 0 : i32
    %c0_i32_3 = arith.constant 0 : i32
    return %arg0, %c0_i32, %2, %c0_i32_2 : i32, i32, i32, i32
  }
  func.func @transform_3(%arg0: i32, %arg1: i32) -> (i32, i32, i32) {
    %c0_i32 = arith.constant 0 : i32
    %c0_i32_0 = arith.constant 0 : i32
    return %arg0, %arg1, %c0_i32 : i32, i32, i32
  }
  func.func @transform_4(%arg0: i32, %arg1: i32) -> (i32, i32, i32) {
    %c1_i32 = arith.constant 1 : i32
    %0 = arith.muli %arg1, %c1_i32 : i32
    %c1_i32_0 = arith.constant 1 : i32
    %1 = arith.subi %0, %c1_i32_0 : i32
    %c0_i32 = arith.constant 0 : i32
    %2 = arith.maxsi %1, %c0_i32 : i32
    %c0_i32_1 = arith.constant 0 : i32
    %c0_i32_2 = arith.constant 0 : i32
    return %arg0, %2, %c0_i32_1 : i32, i32, i32
  }
  func.func @transform_5(%arg0: i32, %arg1: i32) -> (i32, i32, i32, i32) {
    %c0_i32 = arith.constant 0 : i32
    %c0_i32_0 = arith.constant 0 : i32
    %c0_i32_1 = arith.constant 0 : i32
    return %arg0, %c0_i32, %arg1, %c0_i32_0 : i32, i32, i32, i32
  }
  func.func @transform_6(%arg0: i32, %arg1: i32) -> (i32, i32, i32, i32) {
    %c1_i32 = arith.constant 1 : i32
    %0 = arith.muli %arg1, %c1_i32 : i32
    %c1_i32_0 = arith.constant 1 : i32
    %1 = arith.subi %0, %c1_i32_0 : i32
    %c0_i32 = arith.constant 0 : i32
    %2 = arith.maxsi %1, %c0_i32 : i32
    %c0_i32_1 = arith.constant 0 : i32
    %c0_i32_2 = arith.constant 0 : i32
    %c0_i32_3 = arith.constant 0 : i32
    return %arg0, %c0_i32_1, %2, %c0_i32_2 : i32, i32, i32, i32
  }
  func.func @transform_7(%arg0: i32, %arg1: i32) -> (i32, i32, i32, i32) {
    %c1_i32 = arith.constant 1 : i32
    %0 = arith.addi %arg1, %c1_i32 : i32
    %c1_i32_0 = arith.constant 1 : i32
    %1 = arith.muli %0, %c1_i32_0 : i32
    %c1_i32_1 = arith.constant 1 : i32
    %2 = arith.minsi %1, %c1_i32_1 : i32
    %c0_i32 = arith.constant 0 : i32
    %c0_i32_2 = arith.constant 0 : i32
    %c0_i32_3 = arith.constant 0 : i32
    return %arg0, %c0_i32, %2, %c0_i32_2 : i32, i32, i32, i32
  }
  func.func @transform_8(%arg0: i32, %arg1: i32) -> (i32, i32, i32) {
    %c0_i32 = arith.constant 0 : i32
    %c0_i32_0 = arith.constant 0 : i32
    return %arg0, %arg1, %c0_i32 : i32, i32, i32
  }
  func.func @transform_9(%arg0: i32, %arg1: i32) -> (i32, i32, i32) {
    %c1_i32 = arith.constant 1 : i32
    %0 = arith.muli %arg1, %c1_i32 : i32
    %c1_i32_0 = arith.constant 1 : i32
    %1 = arith.subi %0, %c1_i32_0 : i32
    %c0_i32 = arith.constant 0 : i32
    %2 = arith.maxsi %1, %c0_i32 : i32
    %c0_i32_1 = arith.constant 0 : i32
    %c0_i32_2 = arith.constant 0 : i32
    return %arg0, %2, %c0_i32_1 : i32, i32, i32
  }
  func.func @transform_10(%arg0: i32, %arg1: i32) -> (i32, i32, i32, i32) {
    %c0_i32 = arith.constant 0 : i32
    %c0_i32_0 = arith.constant 0 : i32
    %c0_i32_1 = arith.constant 0 : i32
    return %arg0, %c0_i32, %arg1, %c0_i32_0 : i32, i32, i32, i32
  }
  func.func @transform_11(%arg0: i32, %arg1: i32) -> (i32, i32, i32, i32) {
    %c0_i32 = arith.constant 0 : i32
    %c0_i32_0 = arith.constant 0 : i32
    %c0_i32_1 = arith.constant 0 : i32
    return %arg0, %c0_i32, %arg1, %c0_i32_0 : i32, i32, i32, i32
  }
  func.func @transform_12(%arg0: i32, %arg1: i32) -> (i32, i32, i32, i32) {
    %c0_i32 = arith.constant 0 : i32
    %c0_i32_0 = arith.constant 0 : i32
    %c0_i32_1 = arith.constant 0 : i32
    return %arg0, %arg1, %c0_i32, %c0_i32_0 : i32, i32, i32, i32
  }
}

</mosaic_0001>

<llo_original>
// kernel: _lambda_.1
$region0: #{_lambda_.1}
  #allocation0 [shape = 'u32[]', space=smem, size = 0x4, offset = 0x4, fixed_abs, tag = 'smem constant byte address 0x4 - core index']
  #allocation1 [shape = 'u32[72,128]{1,0:T(1,128)}', space=vmem, size = 0x9000, scoped, tag = 'internal scratch']
  %s0 = inlined_call_operand.hbm [shape: f32[2,3,16,128], index: 0, kind: input, shape index: {}, may-alias: {0,1,2}]
  %s1 = inlined_call_operand.hbm [shape: f32[2,3,16,128], index: 1, kind: input, shape index: {}, may-alias: {0,1,2}]
  %s2 = inlined_call_operand.hbm [shape: f32[2,3,16,128], index: 2, kind: input, shape index: {}, may-alias: {0,1,2}]
  %s3 = inlined_call_operand.hbm [shape: f32[2,16,128], index: 3, kind: input, shape index: {}, may-alias: {3,4}]
  %s4 = inlined_call_operand.hbm [shape: f32[2,16,128], index: 4, kind: input, shape index: {}, may-alias: {3,4}]
  %s5 = inlined_call_operand.hbm [shape: f32[2,3,16,128], index: 5, kind: input, shape index: {}, may-alias: {5,6,7}]
  %s6 = inlined_call_operand.hbm [shape: f32[2,3,16,128], index: 6, kind: input, shape index: {}, may-alias: {5,6,7}]
  %s7 = inlined_call_operand.hbm [shape: f32[2,3,16,128], index: 7, kind: input, shape index: {}, may-alias: {5,6,7}]
  %s8 = inlined_call_operand.hbm [shape: f32[2,16,128], index: 8, kind: input, shape index: {}, may-alias: {8,9}]
  %s9 = inlined_call_operand.hbm [shape: f32[2,16,128], index: 9, kind: input, shape index: {}, may-alias: {8,9}]
  %s10 = inlined_call_operand.hbm [shape: f32[2,3,16,128], index: 10, kind: input, shape index: {}]
  %s11 = inlined_call_operand.hbm [shape: f32[2,3,16,128], index: 11, kind: input, shape index: {}]
  %s12 = inlined_call_operand.vmem [shape: f32[2,2,8,128], index: 12, kind: output, shape index: {}]
  %s13 = sld [smem:[#allocation0]]
  $region129: #{_lambda_.1} parent=0
    _
  %s15 = ssub.s32 1, %s13
  %s16 = scalar_select 0, %s15, %s13
  $region1: #{_lambda_.1} parent=0
    #allocation2 [shape = 'u8[24576]{0}', space=vmem, size = 0x6000, scoped, tag = 'input window, operand 0']
    #allocation3 [shape = 's32[2]{0}', space=sflag, size = 0x8, scoped, tag = 'scoped memory for _lambda_.1']
    #allocation4 [shape = 'u8[24576]{0}', space=vmem, size = 0x6000, scoped, tag = 'input window, operand 1']
    #allocation5 [shape = 's32[2]{0}', space=sflag, size = 0x8, scoped, tag = 'scoped memory for _lambda_.1']
    #allocation6 [shape = 'u8[24576]{0}', space=vmem, size = 0x6000, scoped, tag = 'input window, operand 2']
    #allocation7 [shape = 'u8[8192]{0}', space=vmem, size = 0x2000, scoped, tag = 'input window, operand 3']
    #allocation8 [shape = 's32[2]{0}', space=sflag, size = 0x8, scoped, tag = 'scoped memory for _lambda_.1']
    #allocation9 [shape = 'u8[8192]{0}', space=vmem, size = 0x2000, scoped, tag = 'input window, operand 4']
    #allocation10 [shape = 'u8[24576]{0}', space=vmem, size = 0x6000, scoped, tag = 'input window, operand 5']
    #allocation11 [shape = 's32[2]{0}', space=sflag, size = 0x8, scoped, tag = 'scoped memory for _lambda_.1']
    #allocation12 [shape = 'u8[24576]{0}', space=vmem, size = 0x6000, scoped, tag = 'input window, operand 6']
    #allocation13 [shape = 'u8[24576]{0}', space=vmem, size = 0x6000, scoped, tag = 'input window, operand 7']
    #allocation14 [shape = 's32[2]{0}', space=sflag, size = 0x8, scoped, tag = 'scoped memory for _lambda_.1']
    #allocation15 [shape = 'u8[8192]{0}', space=vmem, size = 0x2000, scoped, tag = 'input window, operand 8']
    #allocation16 [shape = 'u8[8192]{0}', space=vmem, size = 0x2000, scoped, tag = 'input window, operand 9']
    #allocation17 [shape = 's32[2]{0}', space=sflag, size = 0x8, scoped, tag = 'scoped memory for _lambda_.1']
    #allocation18 [shape = 'u8[24576]{0}', space=vmem, size = 0x6000, scoped, tag = 'input window, operand 10']
    #allocation19 [shape = 'u8[24576]{0}', space=vmem, size = 0x6000, scoped, tag = 'input window, operand 11']
    #allocation20 [shape = 's32[2]{0}', space=sflag, size = 0x8, scoped, tag = 'scoped memory for _lambda_.1']
    %17 = vsyncpa [#allocation3], 0
    %s18 = scalar_lea.sflag [#allocation3], 1
    %19 = vsyncpa %s18, 0
    %20 = vsyncpa [#allocation5], 0
    %s21 = scalar_lea.sflag [#allocation5], 1
    %22 = vsyncpa %s21, 0
    %23 = vsyncpa [#allocation8], 0
    %s24 = scalar_lea.sflag [#allocation8], 1
    %25 = vsyncpa %s24, 0
    %26 = vsyncpa [#allocation11], 0
    %s27 = scalar_lea.sflag [#allocation11], 1
    %28 = vsyncpa %s27, 0
    %29 = vsyncpa [#allocation14], 0
    %s30 = scalar_lea.sflag [#allocation14], 1
    %31 = vsyncpa %s30, 0
    %32 = vsyncpa [#allocation17], 0
    %s33 = scalar_lea.sflag [#allocation17], 1
    %34 = vsyncpa %s33, 0
    %35 = vsyncpa [#allocation20], 0
    %s36 = scalar_lea.sflag [#allocation20], 1
    %37 = vsyncpa %s36, 0
    loop: start=0, step=1, limit=6
    $region2: #{_lambda_.1} parent=1 // loop_pre_header
      _
    $region3: #{_lambda_.1} parent=1 // loop_header
      %s39 = sphi 0, %s43
      %p40 = scmp.ge.s32.totalorder %s39, 6
      %s46 = sphi 0, %s58
      %s47 = sphi 0, %s54
      %s48 = sphi 0, %s46
      %s49 = sphi 0, %s47
      %s50 = sphi 0, %s48
      %s51 = sphi 0, %s49
      %s63 = sphi 0, %s65
      %s66 = sphi 0, %s63
      %s67 = sphi 0, %s66
      %s83 = sphi 0, %s67
      %s97 = sphi 0, %s99
      %s100 = sphi 0, %s97
      %s101 = sphi 0, %s100
      %s117 = sphi 0, %s101
      %s131 = sphi 0, %s133
      %s134 = sphi 0, %s131
      %s135 = sphi 0, %s134
      %s151 = sphi 0, %s135
      %s159 = sphi 0, %s161
      %s162 = sphi 0, %s159
      %s163 = sphi 0, %s162
      %s179 = sphi 0, %s163
      %s193 = sphi 0, %s195
      %s196 = sphi 0, %s193
      %s197 = sphi 0, %s196
      %s213 = sphi 0, %s197
      %s221 = sphi 0, %s223
      %s224 = sphi 0, %s221
      %s225 = sphi 0, %s224
      %s241 = sphi 0, %s225
      %s255 = sphi 0, %s257
      %s258 = sphi 0, %s255
      %s259 = sphi 0, %s258
      %s275 = sphi 0, %s259
      %s289 = sphi 0, %s291
      %s292 = sphi 0, %s289
      %s293 = sphi 0, %s292
      %s309 = sphi 0, %s293
      %s317 = sphi 0, %s319
      %s320 = sphi 0, %s317
      %s321 = sphi 0, %s320
      %s337 = sphi 0, %s321
      %s351 = sphi 0, %s353
      %s354 = sphi 0, %s351
      %s355 = sphi 0, %s354
      %s371 = sphi 0, %s355
      %s379 = sphi 0, %s381
      %s382 = sphi 0, %s379
      %s383 = sphi 0, %s382
      %s399 = sphi 0, %s383
      %s407 = sphi 0, %s409
      %s410 = sphi 0, %s407
      %s411 = sphi 0, %s410
      %s427 = sphi 0, %s411
      %s435 = sphi 0, %s437
      %s438 = sphi 0, %s435
      %s439 = sphi 0, %s438
      %s455 = sphi 0, %s439
    $region4: #{_lambda_.1} parent=1 // loop_header_branch
      %42 = sbr.rel (%p40) target = $region8
    $region5: #{_lambda_.1} parent=1 // loop_body
      %s44 = ssub.s32 %s39, 1
      %s45 = ssub.s32 %s39, 2
      %s52 = sadd.s32 1, %s47
      %p53 = scmp.ge.s32.totalorder %s52, 2
      %s54 = scalar_select %p53, 0, %s52
      %s55 = sadd.s32 1, %s46
      %s56 = scalar_select %p53, %s55, %s46
      %p57 = scmp.ge.s32.totalorder %s56, 2
      %s58 = scalar_select %p57, 0, %s56
      %s59 = ssub.s32 %s46, %s58
      %s60 = ssub.s32 %s47, %s54
      %s61 = sor.u32 %s59, %s60
      %p62 = scmp.eq.s32.totalorder %s61, 0
      %s64 = sadd.s32 %s63, 1
      %s65 = scalar_select %p62, %s63, %s64
      %p68 = pneg %p62
      %p69 = scmp.eq.s32.totalorder %s39, 3
      %p70 = por %p68, %p69
      %p71 = scmp.ne.s32.totalorder %s63, %s66
      %p72 = scmp.eq.s32.totalorder %s39, 0
      %p73 = por %p71, %p72
      %p74 = scmp.ne.s32.totalorder %s63, %s66
      %p75 = scmp.eq.s32.totalorder %s44, 3
      %p76 = por %p74, %p75
      %p77 = scmp.ne.s32.totalorder %s66, %s67
      %p78 = scmp.eq.s32.totalorder %s44, 0
      %p79 = por %p77, %p78
      %p80 = scmp.ne.s32.totalorder %s66, %s67
      %p81 = scmp.eq.s32.totalorder %s45, 3
      %p82 = por %p80, %p81
      %p84 = scmp.ne.s32.totalorder %s67, %s83
      %p85 = scmp.eq.s32.totalorder %s45, 0
      %p86 = por %p84, %p85
      %s87 = ssub.s32 %s47, 1
      %p88 = scmp.gt.s32.totalorder %s87, 0
      %s89 = scalar_select %p88, %s87, 0
      %s90 = ssub.s32 %s54, 1
      %p91 = scmp.gt.s32.totalorder %s90, 0
      %s92 = scalar_select %p91, %s90, 0
      %s93 = ssub.s32 %s46, %s58
      %s94 = ssub.s32 %s89, %s92
      %s95 = sor.u32 %s93, %s94
      %p96 = scmp.eq.s32.totalorder %s95, 0
      %s98 = sadd.s32 %s97, 1
      %s99 = scalar_select %p96, %s97, %s98
      %p102 = pneg %p96
      %p103 = scmp.eq.s32.totalorder %s39, 3
      %p104 = por %p102, %p103
      %p105 = scmp.ne.s32.totalorder %s97, %s100
      %p106 = scmp.eq.s32.totalorder %s39, 0
      %p107 = por %p105, %p106
      %p108 = scmp.ne.s32.totalorder %s97, %s100
      %p109 = scmp.eq.s32.totalorder %s44, 3
      %p110 = por %p108, %p109
      %p111 = scmp.ne.s32.totalorder %s100, %s101
      %p112 = scmp.eq.s32.totalorder %s44, 0
      %p113 = por %p111, %p112
      %p114 = scmp.ne.s32.totalorder %s100, %s101
      %p115 = scmp.eq.s32.totalorder %s45, 3
      %p116 = por %p114, %p115
      %p118 = scmp.ne.s32.totalorder %s101, %s117
      %p119 = scmp.eq.s32.totalorder %s45, 0
      %p120 = por %p118, %p119
      %s121 = sadd.s32 %s47, 1
      %p122 = scmp.lt.s32.totalorder %s121, 1
      %s123 = scalar_select %p122, %s121, 1
      %s124 = sadd.s32 %s54, 1
      %p125 = scmp.lt.s32.totalorder %s124, 1
      %s126 = scalar_select %p125, %s124, 1
      %s127 = ssub.s32 %s46, %s58
      %s128 = ssub.s32 %s123, %s126
      %s129 = sor.u32 %s127, %s128
      %p130 = scmp.eq.s32.totalorder %s129, 0
      %s132 = sadd.s32 %s131, 1
      %s133 = scalar_select %p130, %s131, %s132
      %p136 = pneg %p130
      %p137 = scmp.eq.s32.totalorder %s39, 3
      %p138 = por %p136, %p137
      %p139 = scmp.ne.s32.totalorder %s131, %s134
      %p140 = scmp.eq.s32.totalorder %s39, 0
      %p141 = por %p139, %p140
      %p142 = scmp.ne.s32.totalorder %s131, %s134
      %p143 = scmp.eq.s32.totalorder %s44, 3
      %p144 = por %p142, %p143
      %p145 = scmp.ne.s32.totalorder %s134, %s135
      %p146 = scmp.eq.s32.totalorder %s44, 0
      %p147 = por %p145, %p146
      %p148 = scmp.ne.s32.totalorder %s134, %s135
      %p149 = scmp.eq.s32.totalorder %s45, 3
      %p150 = por %p148, %p149
      %p152 = scmp.ne.s32.totalorder %s135, %s151
      %p153 = scmp.eq.s32.totalorder %s45, 0
      %p154 = por %p152, %p153
      %s155 = ssub.s32 %s46, %s58
      %s156 = ssub.s32 %s47, %s54
      %s157 = sor.u32 %s155, %s156
      %p158 = scmp.eq.s32.totalorder %s157, 0
      %s160 = sadd.s32 %s159, 1
      %s161 = scalar_select %p158, %s159, %s160
      %p164 = pneg %p158
      %p165 = scmp.eq.s32.totalorder %s39, 3
      %p166 = por %p164, %p165
      %p167 = scmp.ne.s32.totalorder %s159, %s162
      %p168 = scmp.eq.s32.totalorder %s39, 0
      %p169 = por %p167, %p168
      %p170 = scmp.ne.s32.totalorder %s159, %s162
      %p171 = scmp.eq.s32.totalorder %s44, 3
      %p172 = por %p170, %p171
      %p173 = scmp.ne.s32.totalorder %s162, %s163
      %p174 = scmp.eq.s32.totalorder %s44, 0
      %p175 = por %p173, %p174
      %p176 = scmp.ne.s32.totalorder %s162, %s163
      %p177 = scmp.eq.s32.totalorder %s45, 3
      %p178 = por %p176, %p177
      %p180 = scmp.ne.s32.totalorder %s163, %s179
      %p181 = scmp.eq.s32.totalorder %s45, 0
      %p182 = por %p180, %p181
      %s183 = ssub.s32 %s47, 1
      %p184 = scmp.gt.s32.totalorder %s183, 0
      %s185 = scalar_select %p184, %s183, 0
      %s186 = ssub.s32 %s54, 1
      %p187 = scmp.gt.s32.totalorder %s186, 0
      %s188 = scalar_select %p187, %s186, 0
      %s189 = ssub.s32 %s46, %s58
      %s190 = ssub.s32 %s185, %s188
      %s191 = sor.u32 %s189, %s190
      %p192 = scmp.eq.s32.totalorder %s191, 0
      %s194 = sadd.s32 %s193, 1
      %s195 = scalar_select %p192, %s193, %s194
      %p198 = pneg %p192
      %p199 = scmp.eq.s32.totalorder %s39, 3
      %p200 = por %p198, %p199
      %p201 = scmp.ne.s32.totalorder %s193, %s196
      %p202 = scmp.eq.s32.totalorder %s39, 0
      %p203 = por %p201, %p202
      %p204 = scmp.ne.s32.totalorder %s193, %s196
      %p205 = scmp.eq.s32.totalorder %s44, 3
      %p206 = por %p204, %p205
      %p207 = scmp.ne.s32.totalorder %s196, %s197
      %p208 = scmp.eq.s32.totalorder %s44, 0
      %p209 = por %p207, %p208
      %p210 = scmp.ne.s32.totalorder %s196, %s197
      %p211 = scmp.eq.s32.totalorder %s45, 3
      %p212 = por %p210, %p211
      %p214 = scmp.ne.s32.totalorder %s197, %s213
      %p215 = scmp.eq.s32.totalorder %s45, 0
      %p216 = por %p214, %p215
      %s217 = ssub.s32 %s46, %s58
      %s218 = ssub.s32 %s47, %s54
      %s219 = sor.u32 %s217, %s218
      %p220 = scmp.eq.s32.totalorder %s219, 0
      %s222 = sadd.s32 %s221, 1
      %s223 = scalar_select %p220, %s221, %s222
      %p226 = pneg %p220
      %p227 = scmp.eq.s32.totalorder %s39, 3
      %p228 = por %p226, %p227
      %p229 = scmp.ne.s32.totalorder %s221, %s224
      %p230 = scmp.eq.s32.totalorder %s39, 0
      %p231 = por %p229, %p230
      %p232 = scmp.ne.s32.totalorder %s221, %s224
      %p233 = scmp.eq.s32.totalorder %s44, 3
      %p234 = por %p232, %p233
      %p235 = scmp.ne.s32.totalorder %s224, %s225
      %p236 = scmp.eq.s32.totalorder %s44, 0
      %p237 = por %p235, %p236
      %p238 = scmp.ne.s32.totalorder %s224, %s225
      %p239 = scmp.eq.s32.totalorder %s45, 3
      %p240 = por %p238, %p239
      %p242 = scmp.ne.s32.totalorder %s225, %s241
      %p243 = scmp.eq.s32.totalorder %s45, 0
      %p244 = por %p242, %p243
      %s245 = ssub.s32 %s47, 1
      %p246 = scmp.gt.s32.totalorder %s245, 0
      %s247 = scalar_select %p246, %s245, 0
      %s248 = ssub.s32 %s54, 1
      %p249 = scmp.gt.s32.totalorder %s248, 0
      %s250 = scalar_select %p249, %s248, 0
      %s251 = ssub.s32 %s46, %s58
      %s252 = ssub.s32 %s247, %s250
      %s253 = sor.u32 %s251, %s252
      %p254 = scmp.eq.s32.totalorder %s253, 0
      %s256 = sadd.s32 %s255, 1
      %s257 = scalar_select %p254, %s255, %s256
      %p260 = pneg %p254
      %p261 = scmp.eq.s32.totalorder %s39, 3
      %p262 = por %p260, %p261
      %p263 = scmp.ne.s32.totalorder %s255, %s258
      %p264 = scmp.eq.s32.totalorder %s39, 0
      %p265 = por %p263, %p264
      %p266 = scmp.ne.s32.totalorder %s255, %s258
      %p267 = scmp.eq.s32.totalorder %s44, 3
      %p268 = por %p266, %p267
      %p269 = scmp.ne.s32.totalorder %s258, %s259
      %p270 = scmp.eq.s32.totalorder %s44, 0
      %p271 = por %p269, %p270
      %p272 = scmp.ne.s32.totalorder %s258, %s259
      %p273 = scmp.eq.s32.totalorder %s45, 3
      %p274 = por %p272, %p273
      %p276 = scmp.ne.s32.totalorder %s259, %s275
      %p277 = scmp.eq.s32.totalorder %s45, 0
      %p278 = por %p276, %p277
      %s279 = sadd.s32 %s47, 1
      %p280 = scmp.lt.s32.totalorder %s279, 1
      %s281 = scalar_select %p280, %s279, 1
      %s282 = sadd.s32 %s54, 1
      %p283 = scmp.lt.s32.totalorder %s282, 1
      %s284 = scalar_select %p283, %s282, 1
      %s285 = ssub.s32 %s46, %s58
      %s286 = ssub.s32 %s281, %s284
      %s287 = sor.u32 %s285, %s286
      %p288 = scmp.eq.s32.totalorder %s287, 0
      %s290 = sadd.s32 %s289, 1
      %s291 = scalar_select %p288, %s289, %s290
      %p294 = pneg %p288
      %p295 = scmp.eq.s32.totalorder %s39, 3
      %p296 = por %p294, %p295
      %p297 = scmp.ne.s32.totalorder %s289, %s292
      %p298 = scmp.eq.s32.totalorder %s39, 0
      %p299 = por %p297, %p298
      %p300 = scmp.ne.s32.totalorder %s289, %s292
      %p301 = scmp.eq.s32.totalorder %s44, 3
      %p302 = por %p300, %p301
      %p303 = scmp.ne.s32.totalorder %s292, %s293
      %p304 = scmp.eq.s32.totalorder %s44, 0
      %p305 = por %p303, %p304
      %p306 = scmp.ne.s32.totalorder %s292, %s293
      %p307 = scmp.eq.s32.totalorder %s45, 3
      %p308 = por %p306, %p307
      %p310 = scmp.ne.s32.totalorder %s293, %s309
      %p311 = scmp.eq.s32.totalorder %s45, 0
      %p312 = por %p310, %p311
      %s313 = ssub.s32 %s46, %s58
      %s314 = ssub.s32 %s47, %s54
      %s315 = sor.u32 %s313, %s314
      %p316 = scmp.eq.s32.totalorder %s315, 0
      %s318 = sadd.s32 %s317, 1
      %s319 = scalar_select %p316, %s317, %s318
      %p322 = pneg %p316
      %p323 = scmp.eq.s32.totalorder %s39, 3
      %p324 = por %p322, %p323
      %p325 = scmp.ne.s32.totalorder %s317, %s320
      %p326 = scmp.eq.s32.totalorder %s39, 0
      %p327 = por %p325, %p326
      %p328 = scmp.ne.s32.totalorder %s317, %s320
      %p329 = scmp.eq.s32.totalorder %s44, 3
      %p330 = por %p328, %p329
      %p331 = scmp.ne.s32.totalorder %s320, %s321
      %p332 = scmp.eq.s32.totalorder %s44, 0
      %p333 = por %p331, %p332
      %p334 = scmp.ne.s32.totalorder %s320, %s321
      %p335 = scmp.eq.s32.totalorder %s45, 3
      %p336 = por %p334, %p335
      %p338 = scmp.ne.s32.totalorder %s321, %s337
      %p339 = scmp.eq.s32.totalorder %s45, 0
      %p340 = por %p338, %p339
      %s341 = ssub.s32 %s47, 1
      %p342 = scmp.gt.s32.totalorder %s341, 0
      %s343 = scalar_select %p342, %s341, 0
      %s344 = ssub.s32 %s54, 1
      %p345 = scmp.gt.s32.totalorder %s344, 0
      %s346 = scalar_select %p345, %s344, 0
      %s347 = ssub.s32 %s46, %s58
      %s348 = ssub.s32 %s343, %s346
      %s349 = sor.u32 %s347, %s348
      %p350 = scmp.eq.s32.totalorder %s349, 0
      %s352 = sadd.s32 %s351, 1
      %s353 = scalar_select %p350, %s351, %s352
      %p356 = pneg %p350
      %p357 = scmp.eq.s32.totalorder %s39, 3
      %p358 = por %p356, %p357
      %p359 = scmp.ne.s32.totalorder %s351, %s354
      %p360 = scmp.eq.s32.totalorder %s39, 0
      %p361 = por %p359, %p360
      %p362 = scmp.ne.s32.totalorder %s351, %s354
      %p363 = scmp.eq.s32.totalorder %s44, 3
      %p364 = por %p362, %p363
      %p365 = scmp.ne.s32.totalorder %s354, %s355
      %p366 = scmp.eq.s32.totalorder %s44, 0
      %p367 = por %p365, %p366
      %p368 = scmp.ne.s32.totalorder %s354, %s355
      %p369 = scmp.eq.s32.totalorder %s45, 3
      %p370 = por %p368, %p369
      %p372 = scmp.ne.s32.totalorder %s355, %s371
      %p373 = scmp.eq.s32.totalorder %s45, 0
      %p374 = por %p372, %p373
      %s375 = ssub.s32 %s46, %s58
      %s376 = ssub.s32 %s47, %s54
      %s377 = sor.u32 %s375, %s376
      %p378 = scmp.eq.s32.totalorder %s377, 0
      %s380 = sadd.s32 %s379, 1
      %s381 = scalar_select %p378, %s379, %s380
      %p384 = pneg %p378
      %p385 = scmp.eq.s32.totalorder %s39, 3
      %p386 = por %p384, %p385
      %p387 = scmp.ne.s32.totalorder %s379, %s382
      %p388 = scmp.eq.s32.totalorder %s39, 0
      %p389 = por %p387, %p388
      %p390 = scmp.ne.s32.totalorder %s379, %s382
      %p391 = scmp.eq.s32.totalorder %s44, 3
      %p392 = por %p390, %p391
      %p393 = scmp.ne.s32.totalorder %s382, %s383
      %p394 = scmp.eq.s32.totalorder %s44, 0
      %p395 = por %p393, %p394
      %p396 = scmp.ne.s32.totalorder %s382, %s383
      %p397 = scmp.eq.s32.totalorder %s45, 3
      %p398 = por %p396, %p397
      %p400 = scmp.ne.s32.totalorder %s383, %s399
      %p401 = scmp.eq.s32.totalorder %s45, 0
      %p402 = por %p400, %p401
      %s403 = ssub.s32 %s46, %s58
      %s404 = ssub.s32 %s47, %s54
      %s405 = sor.u32 %s403, %s404
      %p406 = scmp.eq.s32.totalorder %s405, 0
      %s408 = sadd.s32 %s407, 1
      %s409 = scalar_select %p406, %s407, %s408
      %p412 = pneg %p406
      %p413 = scmp.eq.s32.totalorder %s39, 3
      %p414 = por %p412, %p413
      %p415 = scmp.ne.s32.totalorder %s407, %s410
      %p416 = scmp.eq.s32.totalorder %s39, 0
      %p417 = por %p415, %p416
      %p418 = scmp.ne.s32.totalorder %s407, %s410
      %p419 = scmp.eq.s32.totalorder %s44, 3
      %p420 = por %p418, %p419
      %p421 = scmp.ne.s32.totalorder %s410, %s411
      %p422 = scmp.eq.s32.totalorder %s44, 0
      %p423 = por %p421, %p422
      %p424 = scmp.ne.s32.totalorder %s410, %s411
      %p425 = scmp.eq.s32.totalorder %s45, 3
      %p426 = por %p424, %p425
      %p428 = scmp.ne.s32.totalorder %s411, %s427
      %p429 = scmp.eq.s32.totalorder %s45, 0
      %p430 = por %p428, %p429
      %s431 = ssub.s32 %s46, %s58
      %s432 = ssub.s32 %s47, %s54
      %s433 = sor.u32 %s431, %s432
      %p434 = scmp.eq.s32.totalorder %s433, 0
      %s436 = sadd.s32 %s435, 1
      %s437 = scalar_select %p434, %s435, %s436
      %p440 = pneg %p434
      %p441 = scmp.eq.s32.totalorder %s39, 3
      %p442 = por %p440, %p441
      %p443 = scmp.ne.s32.totalorder %s435, %s438
      %p444 = scmp.eq.s32.totalorder %s39, 0
      %p445 = por %p443, %p444
      %p446 = scmp.ne.s32.totalorder %s435, %s438
      %p447 = scmp.eq.s32.totalorder %s44, 3
      %p448 = por %p446, %p447
      %p449 = scmp.ne.s32.totalorder %s438, %s439
      %p450 = scmp.eq.s32.totalorder %s44, 0
      %p451 = por %p449, %p450
      %p452 = scmp.ne.s32.totalorder %s438, %s439
      %p453 = scmp.eq.s32.totalorder %s45, 3
      %p454 = por %p452, %p453
      %p456 = scmp.ne.s32.totalorder %s439, %s455
      %p457 = scmp.eq.s32.totalorder %s45, 0
      %p458 = por %p456, %p457
      %p459 = scmp.le.s32.totalorder 1, %s39
      %p460 = scmp.lt.s32.totalorder %s39, 5
      %p461 = pnand %p459, %p460
      %p462 = pneg %p461
      // Predicated region
      $region9: #{_lambda_.1} parent=5 // pred_check
        _
      $region10: #{_lambda_.1} parent=5 // pred_check_branch
        %464 = sbr.rel (%p461) target = $region12
      $region11: #{_lambda_.1} parent=5 // pred_region
        %s465 = ssub.s32 %s39, 1
      $region12: #{_lambda_.1} parent=5 // pred_fallthru
        _
      %p466 = scmp.lt.s32.totalorder %s39, 4
      // Predicated region
      $region13: #{_lambda_.1} parent=5 // pred_check
        %p467 = pneg %p466
      $region14: #{_lambda_.1} parent=5 // pred_check_branch
        %469 = sbr.rel (%p467) target = $region16
      $region15: #{_lambda_.1} parent=5 // pred_region
        // Predicated region
        $region17: #{_lambda_.1} parent=15 // pred_check
          %p470 = pneg %p73
        $region18: #{_lambda_.1} parent=15 // pred_check_branch
          %472 = sbr.rel (%p470) target = $region20
        $region19: #{_lambda_.1} parent=15 // pred_region
          %s473 = sand.u32 %s63, 1
          %s474 = scalar_lea.sflag [#allocation3], %s473
          %s475 = sand.u32 %s63, 1
          %s476 = smul.addr %s475, 24
          %s477 = scalar_lea.vmem [#allocation2], %s476
          %479 = vsyncadd %s474, 0
          %s480 = smul.addr %s46, 6
          %s481 = sadd.s32 %s47, %s480
          %s482 = smul.addr %s481, 8
          %s483 = scalar_lea.hbm %s0, %s482
          %s484 = sshll.u32 %s483, 4
          %s485 = int_to_ptr.hbm [resolvable:$true] %s484
          %s486 = sshll.u32 %s477, 4
          %s487 = int_to_ptr.vmem [resolvable:$true] %s486
          %492 = dma.hbm_to_vmem [thread:$0]  %s485, 384, %s487, %s474, 256, 128, 8
        $region20: #{_lambda_.1} parent=15 // pred_fallthru
          _
        // Predicated region
        $region21: #{_lambda_.1} parent=15 // pred_check
          %p493 = pneg %p107
        $region22: #{_lambda_.1} parent=15 // pred_check_branch
          %495 = sbr.rel (%p493) target = $region24
        $region23: #{_lambda_.1} parent=15 // pred_region
          %s496 = sand.u32 %s39, 1
          %s497 = scalar_lea.sflag [#allocation5], %s496
          %s498 = sand.u32 %s97, 1
          %s499 = smul.addr %s498, 24
          %s500 = scalar_lea.vmem [#allocation4], %s499
          %s501 = ssub.s32 %s47, 1
          %p502 = scmp.gt.s32.totalorder %s501, 0
          %s503 = scalar_select %p502, %s501, 0
          %505 = vsyncadd %s497, 0
          %s506 = smul.addr %s46, 6
          %s507 = sadd.s32 %s503, %s506
          %s508 = smul.addr %s507, 8
          %s509 = scalar_lea.hbm %s1, %s508
          %s510 = sshll.u32 %s509, 4
          %s511 = int_to_ptr.hbm [resolvable:$true] %s510
          %s512 = sshll.u32 %s500, 4
          %s513 = int_to_ptr.vmem [resolvable:$true] %s512
          %518 = dma.hbm_to_vmem [thread:$0]  %s511, 384, %s513, %s497, 256, 128, 8
        $region24: #{_lambda_.1} parent=15 // pred_fallthru
          _
        // Predicated region
        $region25: #{_lambda_.1} parent=15 // pred_check
          %p519 = pneg %p141
        $region26: #{_lambda_.1} parent=15 // pred_check_branch
          %521 = sbr.rel (%p519) target = $region28
        $region27: #{_lambda_.1} parent=15 // pred_region
          %s522 = sand.u32 %s39, 1
          %s523 = scalar_lea.sflag [#allocation5], %s522
          %s524 = sand.u32 %s131, 1
          %s525 = smul.addr %s524, 24
          %s526 = scalar_lea.vmem [#allocation6], %s525
          %s527 = sadd.s32 %s47, 1
          %p528 = scmp.lt.s32.totalorder %s527, 1
          %s529 = scalar_select %p528, %s527, 1
          %531 = vsyncadd %s523, 0
          %s532 = smul.addr %s46, 6
          %s533 = sadd.s32 %s529, %s532
          %s534 = smul.addr %s533, 8
          %s535 = scalar_lea.hbm %s2, %s534
          %s536 = sshll.u32 %s535, 4
          %s537 = int_to_ptr.hbm [resolvable:$true] %s536
          %s538 = sshll.u32 %s526, 4
          %s539 = int_to_ptr.vmem [resolvable:$true] %s538
          %544 = dma.hbm_to_vmem [thread:$0]  %s537, 384, %s539, %s523, 256, 128, 8
        $region28: #{_lambda_.1} parent=15 // pred_fallthru
          _
        // Predicated region
        $region29: #{_lambda_.1} parent=15 // pred_check
          %p545 = pneg %p169
        $region30: #{_lambda_.1} parent=15 // pred_check_branch
          %547 = sbr.rel (%p545) target = $region32
        $region31: #{_lambda_.1} parent=15 // pred_region
          %s548 = sand.u32 %s39, 1
          %s549 = scalar_lea.sflag [#allocation8], %s548
          %s550 = sand.u32 %s159, 1
          %s551 = smul.addr %s550, 8
          %s552 = scalar_lea.vmem [#allocation7], %s551
          %554 = vsyncadd %s549, 0
          %s555 = smul.addr %s46, 2
          %s556 = sadd.s32 %s47, %s555
          %s557 = smul.addr %s556, 8
          %s558 = scalar_lea.hbm %s3, %s557
          %s560 = sshll.u32 %s558, 4
          %s561 = int_to_ptr.hbm [resolvable:$true] %s560
          %s562 = sshll.u32 %s552, 4
          %s563 = int_to_ptr.vmem [resolvable:$true] %s562
          %565 = dma.hbm_to_vmem [thread:$0]  %s561, 128, %s563, %s549
        $region32: #{_lambda_.1} parent=15 // pred_fallthru
          _
        // Predicated region
        $region33: #{_lambda_.1} parent=15 // pred_check
          %p566 = pneg %p203
        $region34: #{_lambda_.1} parent=15 // pred_check_branch
          %568 = sbr.rel (%p566) target = $region36
        $region35: #{_lambda_.1} parent=15 // pred_region
          %s569 = sand.u32 %s39, 1
          %s570 = scalar_lea.sflag [#allocation8], %s569
          %s571 = sand.u32 %s193, 1
          %s572 = smul.addr %s571, 8
          %s573 = scalar_lea.vmem [#allocation9], %s572
          %s574 = ssub.s32 %s47, 1
          %p575 = scmp.gt.s32.totalorder %s574, 0
          %s576 = scalar_select %p575, %s574, 0
          %578 = vsyncadd %s570, 0
          %s579 = smul.addr %s46, 2
          %s580 = sadd.s32 %s576, %s579
          %s581 = smul.addr %s580, 8
          %s582 = scalar_lea.hbm %s4, %s581
          %s584 = sshll.u32 %s582, 4
          %s585 = int_to_ptr.hbm [resolvable:$true] %s584
          %s586 = sshll.u32 %s573, 4
          %s587 = int_to_ptr.vmem [resolvable:$true] %s586
          %589 = dma.hbm_to_vmem [thread:$0]  %s585, 128, %s587, %s570
        $region36: #{_lambda_.1} parent=15 // pred_fallthru
          _
        // Predicated region
        $region37: #{_lambda_.1} parent=15 // pred_check
          %p590 = pneg %p231
        $region38: #{_lambda_.1} parent=15 // pred_check_branch
          %592 = sbr.rel (%p590) target = $region40
        $region39: #{_lambda_.1} parent=15 // pred_region
          %s593 = sand.u32 %s39, 1
          %s594 = scalar_lea.sflag [#allocation11], %s593
          %s595 = sand.u32 %s221, 1
          %s596 = smul.addr %s595, 24
          %s597 = scalar_lea.vmem [#allocation10], %s596
          %599 = vsyncadd %s594, 0
          %s600 = smul.addr %s46, 6
          %s601 = sadd.s32 %s47, %s600
          %s602 = smul.addr %s601, 8
          %s603 = scalar_lea.hbm %s5, %s602
          %s604 = sshll.u32 %s603, 4
          %s605 = int_to_ptr.hbm [resolvable:$true] %s604
          %s606 = sshll.u32 %s597, 4
          %s607 = int_to_ptr.vmem [resolvable:$true] %s606
          %612 = dma.hbm_to_vmem [thread:$0]  %s605, 384, %s607, %s594, 256, 128, 8
        $region40: #{_lambda_.1} parent=15 // pred_fallthru
          _
        // Predicated region
        $region41: #{_lambda_.1} parent=15 // pred_check
          %p613 = pneg %p265
        $region42: #{_lambda_.1} parent=15 // pred_check_branch
          %615 = sbr.rel (%p613) target = $region44
        $region43: #{_lambda_.1} parent=15 // pred_region
          %s616 = sand.u32 %s39, 1
          %s617 = scalar_lea.sflag [#allocation11], %s616
          %s618 = sand.u32 %s255, 1
          %s619 = smul.addr %s618, 24
          %s620 = scalar_lea.vmem [#allocation12], %s619
          %s621 = ssub.s32 %s47, 1
          %p622 = scmp.gt.s32.totalorder %s621, 0
          %s623 = scalar_select %p622, %s621, 0
          %625 = vsyncadd %s617, 0
          %s626 = smul.addr %s46, 6
          %s627 = sadd.s32 %s623, %s626
          %s628 = smul.addr %s627, 8
          %s629 = scalar_lea.hbm %s6, %s628
          %s630 = sshll.u32 %s629, 4
          %s631 = int_to_ptr.hbm [resolvable:$true] %s630
          %s632 = sshll.u32 %s620, 4
          %s633 = int_to_ptr.vmem [resolvable:$true] %s632
          %638 = dma.hbm_to_vmem [thread:$0]  %s631, 384, %s633, %s617, 256, 128, 8
        $region44: #{_lambda_.1} parent=15 // pred_fallthru
          _
        // Predicated region
        $region45: #{_lambda_.1} parent=15 // pred_check
          %p639 = pneg %p299
        $region46: #{_lambda_.1} parent=15 // pred_check_branch
          %641 = sbr.rel (%p639) target = $region48
        $region47: #{_lambda_.1} parent=15 // pred_region
          %s642 = sand.u32 %s39, 1
          %s643 = scalar_lea.sflag [#allocation14], %s642
          %s644 = sand.u32 %s289, 1
          %s645 = smul.addr %s644, 24
          %s646 = scalar_lea.vmem [#allocation13], %s645
          %s647 = sadd.s32 %s47, 1
          %p648 = scmp.lt.s32.totalorder %s647, 1
          %s649 = scalar_select %p648, %s647, 1
          %651 = vsyncadd %s643, 0
          %s652 = smul.addr %s46, 6
          %s653 = sadd.s32 %s649, %s652
          %s654 = smul.addr %s653, 8
          %s655 = scalar_lea.hbm %s7, %s654
          %s656 = sshll.u32 %s655, 4
          %s657 = int_to_ptr.hbm [resolvable:$true] %s656
          %s658 = sshll.u32 %s646, 4
          %s659 = int_to_ptr.vmem [resolvable:$true] %s658
          %664 = dma.hbm_to_vmem [thread:$0]  %s657, 384, %s659, %s643, 256, 128, 8
        $region48: #{_lambda_.1} parent=15 // pred_fallthru
          _
        // Predicated region
        $region49: #{_lambda_.1} parent=15 // pred_check
          %p665 = pneg %p327
        $region50: #{_lambda_.1} parent=15 // pred_check_branch
          %667 = sbr.rel (%p665) target = $region52
        $region51: #{_lambda_.1} parent=15 // pred_region
          %s668 = sand.u32 %s39, 1
          %s669 = scalar_lea.sflag [#allocation14], %s668
          %s670 = sand.u32 %s317, 1
          %s671 = smul.addr %s670, 8
          %s672 = scalar_lea.vmem [#allocation15], %s671
          %674 = vsyncadd %s669, 0
          %s675 = smul.addr %s46, 2
          %s676 = sadd.s32 %s47, %s675
          %s677 = smul.addr %s676, 8
          %s678 = scalar_lea.hbm %s8, %s677
          %s680 = sshll.u32 %s678, 4
          %s681 = int_to_ptr.hbm [resolvable:$true] %s680
          %s682 = sshll.u32 %s672, 4
          %s683 = int_to_ptr.vmem [resolvable:$true] %s682
          %685 = dma.hbm_to_vmem [thread:$0]  %s681, 128, %s683, %s669
        $region52: #{_lambda_.1} parent=15 // pred_fallthru
          _
        // Predicated region
        $region53: #{_lambda_.1} parent=15 // pred_check
          %p686 = pneg %p361
        $region54: #{_lambda_.1} parent=15 // pred_check_branch
          %688 = sbr.rel (%p686) target = $region56
        $region55: #{_lambda_.1} parent=15 // pred_region
          %s689 = sand.u32 %s39, 1
          %s690 = scalar_lea.sflag [#allocation17], %s689
          %s691 = sand.u32 %s351, 1
          %s692 = smul.addr %s691, 8
          %s693 = scalar_lea.vmem [#allocation16], %s692
          %s694 = ssub.s32 %s47, 1
          %p695 = scmp.gt.s32.totalorder %s694, 0
          %s696 = scalar_select %p695, %s694, 0
          %698 = vsyncadd %s690, 0
          %s699 = smul.addr %s46, 2
          %s700 = sadd.s32 %s696, %s699
          %s701 = smul.addr %s700, 8
          %s702 = scalar_lea.hbm %s9, %s701
          %s704 = sshll.u32 %s702, 4
          %s705 = int_to_ptr.hbm [resolvable:$true] %s704
          %s706 = sshll.u32 %s693, 4
          %s707 = int_to_ptr.vmem [resolvable:$true] %s706
          %709 = dma.hbm_to_vmem [thread:$0]  %s705, 128, %s707, %s690
        $region56: #{_lambda_.1} parent=15 // pred_fallthru
          _
        // Predicated region
        $region57: #{_lambda_.1} parent=15 // pred_check
          %p710 = pneg %p389
        $region58: #{_lambda_.1} parent=15 // pred_check_branch
          %712 = sbr.rel (%p710) target = $region60
        $region59: #{_lambda_.1} parent=15 // pred_region
          %s713 = sand.u32 %s39, 1
          %s714 = scalar_lea.sflag [#allocation17], %s713
          %s715 = sand.u32 %s379, 1
          %s716 = smul.addr %s715, 24
          %s717 = scalar_lea.vmem [#allocation18], %s716
          %719 = vsyncadd %s714, 0
          %s720 = smul.addr %s46, 6
          %s721 = sadd.s32 %s47, %s720
          %s722 = smul.addr %s721, 8
          %s723 = scalar_lea.hbm %s10, %s722
          %s724 = sshll.u32 %s723, 4
          %s725 = int_to_ptr.hbm [resolvable:$true] %s724
          %s726 = sshll.u32 %s717, 4
          %s727 = int_to_ptr.vmem [resolvable:$true] %s726
          %732 = dma.hbm_to_vmem [thread:$0]  %s725, 384, %s727, %s714, 256, 128, 8
        $region60: #{_lambda_.1} parent=15 // pred_fallthru
          _
        // Predicated region
        $region61: #{_lambda_.1} parent=15 // pred_check
          %p733 = pneg %p417
        $region62: #{_lambda_.1} parent=15 // pred_check_branch
          %735 = sbr.rel (%p733) target = $region64
        $region63: #{_lambda_.1} parent=15 // pred_region
          %s736 = sand.u32 %s407, 1
          %s737 = scalar_lea.sflag [#allocation20], %s736
          %s738 = sand.u32 %s407, 1
          %s739 = smul.addr %s738, 24
          %s740 = scalar_lea.vmem [#allocation19], %s739
          %742 = vsyncadd %s737, 0
          %s743 = smul.addr %s46, 6
          %s744 = sadd.s32 %s47, %s743
          %s745 = smul.addr %s744, 8
          %s746 = scalar_lea.hbm %s11, %s745
          %s747 = sshll.u32 %s746, 4
          %s748 = int_to_ptr.hbm [resolvable:$true] %s747
          %s749 = sshll.u32 %s740, 4
          %s750 = int_to_ptr.vmem [resolvable:$true] %s749
          %755 = dma.hbm_to_vmem [thread:$0]  %s748, 384, %s750, %s737, 256, 128, 8
        $region64: #{_lambda_.1} parent=15 // pred_fallthru
          _
      $region16: #{_lambda_.1} parent=5 // pred_fallthru
        _
      %p756 = scmp.le.s32.totalorder 1, %s39
      %p757 = scmp.lt.s32.totalorder %s39, 5
      %p758 = pnand %p756, %p757
      %p759 = pneg %p758
      // Predicated region
      $region65: #{_lambda_.1} parent=5 // pred_check
        _
      $region66: #{_lambda_.1} parent=5 // pred_check_branch
        %761 = sbr.rel (%p758) target = $region68
      $region67: #{_lambda_.1} parent=5 // pred_region
        %s762 = ssub.s32 %s39, 1
        %s763 = sand.u32 %s66, 1
        %s764 = scalar_lea.sflag [#allocation3], %s763
        %s765 = sand.u32 %s66, 1
        %s766 = smul.addr %s765, 24
        %s767 = scalar_lea.vmem [#allocation2], %s766
        // Predicated region
        $region69: #{_lambda_.1} parent=67 // pred_check
          %p768 = pneg %p79
        $region70: #{_lambda_.1} parent=67 // pred_check_branch
          %770 = sbr.rel (%p768) target = $region72
        $region71: #{_lambda_.1} parent=67 // pred_region
          %772 = dma.done %s764, 384
        $region72: #{_lambda_.1} parent=67 // pred_fallthru
          _
        %s773 = sand.u32 %s44, 1
        %s774 = scalar_lea.sflag [#allocation5], %s773
        %s775 = sand.u32 %s100, 1
        %s776 = smul.addr %s775, 24
        %s777 = scalar_lea.vmem [#allocation4], %s776
        // Predicated region
        $region73: #{_lambda_.1} parent=67 // pred_check
          %p778 = pneg %p113
        $region74: #{_lambda_.1} parent=67 // pred_check_branch
          %780 = sbr.rel (%p778) target = $region76
        $region75: #{_lambda_.1} parent=67 // pred_region
          %782 = dma.done %s774, 384
        $region76: #{_lambda_.1} parent=67 // pred_fallthru
          _
        %s783 = sand.u32 %s44, 1
        %s784 = scalar_lea.sflag [#allocation5], %s783
        %s785 = sand.u32 %s134, 1
        %s786 = smul.addr %s785, 24
        %s787 = scalar_lea.vmem [#allocation6], %s786
        // Predicated region
        $region77: #{_lambda_.1} parent=67 // pred_check
          %p788 = pneg %p147
        $region78: #{_lambda_.1} parent=67 // pred_check_branch
          %790 = sbr.rel (%p788) target = $region80
        $region79: #{_lambda_.1} parent=67 // pred_region
          %792 = dma.done %s784, 384
        $region80: #{_lambda_.1} parent=67 // pred_fallthru
          _
        %s793 = sand.u32 %s44, 1
        %s794 = scalar_lea.sflag [#allocation8], %s793
        %s795 = sand.u32 %s162, 1
        %s796 = smul.addr %s795, 8
        %s797 = scalar_lea.vmem [#allocation7], %s796
        // Predicated region
        $region81: #{_lambda_.1} parent=67 // pred_check
          %p798 = pneg %p175
        $region82: #{_lambda_.1} parent=67 // pred_check_branch
          %800 = sbr.rel (%p798) target = $region84
        $region83: #{_lambda_.1} parent=67 // pred_region
          %802 = dma.done %s794, 128
        $region84: #{_lambda_.1} parent=67 // pred_fallthru
          _
        %s803 = sand.u32 %s44, 1
        %s804 = scalar_lea.sflag [#allocation8], %s803
        %s805 = sand.u32 %s196, 1
        %s806 = smul.addr %s805, 8
        %s807 = scalar_lea.vmem [#allocation9], %s806
        // Predicated region
        $region85: #{_lambda_.1} parent=67 // pred_check
          %p808 = pneg %p209
        $region86: #{_lambda_.1} parent=67 // pred_check_branch
          %810 = sbr.rel (%p808) target = $region88
        $region87: #{_lambda_.1} parent=67 // pred_region
          %812 = dma.done %s804, 128
        $region88: #{_lambda_.1} parent=67 // pred_fallthru
          _
        %s813 = sand.u32 %s44, 1
        %s814 = scalar_lea.sflag [#allocation11], %s813
        %s815 = sand.u32 %s224, 1
        %s816 = smul.addr %s815, 24
        %s817 = scalar_lea.vmem [#allocation10], %s816
        // Predicated region
        $region89: #{_lambda_.1} parent=67 // pred_check
          %p818 = pneg %p237
        $region90: #{_lambda_.1} parent=67 // pred_check_branch
          %820 = sbr.rel (%p818) target = $region92
        $region91: #{_lambda_.1} parent=67 // pred_region
          %822 = dma.done %s814, 384
        $region92: #{_lambda_.1} parent=67 // pred_fallthru
          _
        %s823 = sand.u32 %s44, 1
        %s824 = scalar_lea.sflag [#allocation11], %s823
        %s825 = sand.u32 %s258, 1
        %s826 = smul.addr %s825, 24
        %s827 = scalar_lea.vmem [#allocation12], %s826
        // Predicated region
        $region93: #{_lambda_.1} parent=67 // pred_check
          %p828 = pneg %p271
        $region94: #{_lambda_.1} parent=67 // pred_check_branch
          %830 = sbr.rel (%p828) target = $region96
        $region95: #{_lambda_.1} parent=67 // pred_region
          %832 = dma.done %s824, 384
        $region96: #{_lambda_.1} parent=67 // pred_fallthru
          _
        %s833 = sand.u32 %s44, 1
        %s834 = scalar_lea.sflag [#allocation14], %s833
        %s835 = sand.u32 %s292, 1
        %s836 = smul.addr %s835, 24
        %s837 = scalar_lea.vmem [#allocation13], %s836
        // Predicated region
        $region97: #{_lambda_.1} parent=67 // pred_check
          %p838 = pneg %p305
        $region98: #{_lambda_.1} parent=67 // pred_check_branch
          %840 = sbr.rel (%p838) target = $region100
        $region99: #{_lambda_.1} parent=67 // pred_region
          %842 = dma.done %s834, 384
        $region100: #{_lambda_.1} parent=67 // pred_fallthru
          _
        %s843 = sand.u32 %s44, 1
        %s844 = scalar_lea.sflag [#allocation14], %s843
        %s845 = sand.u32 %s320, 1
        %s846 = smul.addr %s845, 8
        %s847 = scalar_lea.vmem [#allocation15], %s846
        // Predicated region
        $region101: #{_lambda_.1} parent=67 // pred_check
          %p848 = pneg %p333
        $region102: #{_lambda_.1} parent=67 // pred_check_branch
          %850 = sbr.rel (%p848) target = $region104
        $region103: #{_lambda_.1} parent=67 // pred_region
          %852 = dma.done %s844, 128
        $region104: #{_lambda_.1} parent=67 // pred_fallthru
          _
        %s853 = sand.u32 %s44, 1
        %s854 = scalar_lea.sflag [#allocation17], %s853
        %s855 = sand.u32 %s354, 1
        %s856 = smul.addr %s855, 8
        %s857 = scalar_lea.vmem [#allocation16], %s856
        // Predicated region
        $region105: #{_lambda_.1} parent=67 // pred_check
          %p858 = pneg %p367
        $region106: #{_lambda_.1} parent=67 // pred_check_branch
          %860 = sbr.rel (%p858) target = $region108
        $region107: #{_lambda_.1} parent=67 // pred_region
          %862 = dma.done %s854, 128
        $region108: #{_lambda_.1} parent=67 // pred_fallthru
          _
        %s863 = sand.u32 %s44, 1
        %s864 = scalar_lea.sflag [#allocation17], %s863
        %s865 = sand.u32 %s382, 1
        %s866 = smul.addr %s865, 24
        %s867 = scalar_lea.vmem [#allocation18], %s866
        // Predicated region
        $region109: #{_lambda_.1} parent=67 // pred_check
          %p868 = pneg %p395
        $region110: #{_lambda_.1} parent=67 // pred_check_branch
          %870 = sbr.rel (%p868) target = $region112
        $region111: #{_lambda_.1} parent=67 // pred_region
          %872 = dma.done %s864, 384
        $region112: #{_lambda_.1} parent=67 // pred_fallthru
          _
        %s873 = sand.u32 %s410, 1
        %s874 = scalar_lea.sflag [#allocation20], %s873
        %s875 = sand.u32 %s410, 1
        %s876 = smul.addr %s875, 24
        %s877 = scalar_lea.vmem [#allocation19], %s876
        // Predicated region
        $region113: #{_lambda_.1} parent=67 // pred_check
          %p878 = pneg %p423
        $region114: #{_lambda_.1} parent=67 // pred_check_branch
          %880 = sbr.rel (%p878) target = $region116
        $region115: #{_lambda_.1} parent=67 // pred_region
          %882 = dma.done %s874, 384
        $region116: #{_lambda_.1} parent=67 // pred_fallthru
          _
        %s883 = sand.u32 %s66, 1
        %s884 = scalar_lea.sflag [#allocation3], %s883
        %s885 = sand.u32 %s66, 1
        %s886 = smul.addr %s885, 24
        %s887 = scalar_lea.vmem [#allocation2], %s886
        %p888 = pneg %p79
        %p889 = pneg %p76
        %s890 = sand.u32 %s44, 1
        %s891 = scalar_lea.sflag [#allocation5], %s890
        %s892 = sand.u32 %s100, 1
        %s893 = smul.addr %s892, 24
        %s894 = scalar_lea.vmem [#allocation4], %s893
        %p895 = pneg %p113
        %p896 = pneg %p110
        %s897 = sand.u32 %s44, 1
        %s898 = scalar_lea.sflag [#allocation5], %s897
        %s899 = sand.u32 %s134, 1
        %s900 = smul.addr %s899, 24
        %s901 = scalar_lea.vmem [#allocation6], %s900
        %p902 = pneg %p147
        %p903 = pneg %p144
        %s904 = sand.u32 %s44, 1
        %s905 = scalar_lea.sflag [#allocation8], %s904
        %s906 = sand.u32 %s162, 1
        %s907 = smul.addr %s906, 8
        %s908 = scalar_lea.vmem [#allocation7], %s907
        %p909 = pneg %p175
        %p910 = pneg %p172
        %s911 = sand.u32 %s44, 1
        %s912 = scalar_lea.sflag [#allocation8], %s911
        %s913 = sand.u32 %s196, 1
        %s914 = smul.addr %s913, 8
        %s915 = scalar_lea.vmem [#allocation9], %s914
        %p916 = pneg %p209
        %p917 = pneg %p206
        %s918 = sand.u32 %s44, 1
        %s919 = scalar_lea.sflag [#allocation11], %s918
        %s920 = sand.u32 %s224, 1
        %s921 = smul.addr %s920, 24
        %s922 = scalar_lea.vmem [#allocation10], %s921
        %p923 = pneg %p237
        %p924 = pneg %p234
        %s925 = sand.u32 %s44, 1
        %s926 = scalar_lea.sflag [#allocation11], %s925
        %s927 = sand.u32 %s258, 1
        %s928 = smul.addr %s927, 24
        %s929 = scalar_lea.vmem [#allocation12], %s928
        %p930 = pneg %p271
        %p931 = pneg %p268
        %s932 = sand.u32 %s44, 1
        %s933 = scalar_lea.sflag [#allocation14], %s932
        %s934 = sand.u32 %s292, 1
        %s935 = smul.addr %s934, 24
        %s936 = scalar_lea.vmem [#allocation13], %s935
        %p937 = pneg %p305
        %p938 = pneg %p302
        %s939 = sand.u32 %s44, 1
        %s940 = scalar_lea.sflag [#allocation14], %s939
        %s941 = sand.u32 %s320, 1
        %s942 = smul.addr %s941, 8
        %s943 = scalar_lea.vmem [#allocation15], %s942
        %p944 = pneg %p333
        %p945 = pneg %p330
        %s946 = sand.u32 %s44, 1
        %s947 = scalar_lea.sflag [#allocation17], %s946
        %s948 = sand.u32 %s354, 1
        %s949 = smul.addr %s948, 8
        %s950 = scalar_lea.vmem [#allocation16], %s949
        %p951 = pneg %p367
        %p952 = pneg %p364
        %s953 = sand.u32 %s44, 1
        %s954 = scalar_lea.sflag [#allocation17], %s953
        %s955 = sand.u32 %s382, 1
        %s956 = smul.addr %s955, 24
        %s957 = scalar_lea.vmem [#allocation18], %s956
        %p958 = pneg %p395
        %p959 = pneg %p392
        %s960 = sand.u32 %s410, 1
        %s961 = scalar_lea.sflag [#allocation20], %s960
        %s962 = sand.u32 %s410, 1
        %s963 = smul.addr %s962, 24
        %s964 = scalar_lea.vmem [#allocation19], %s963
        %p965 = pneg %p423
        %p966 = pneg %p420
        %p967 = pneg %p451
        %p968 = pneg %p448
        %p969 = scmp.lt.s32.totalorder %s48, 1
        %s970 = scalar_select %p969, %s48, 1
        %p971 = scmp.lt.s32.totalorder %s49, 1
        %s972 = scalar_select %p971, %s49, 1
        %s973 = smul.addr %s970, 2
        %s974 = sadd.s32 %s972, %s973
        %s975 = smul.addr %s974, 8
        %s976 = scalar_lea.vmem %s12, %s975
        %s977 = ssub.s32 %s49, 1
        %p978 = scmp.gt.s32.totalorder %s977, 0
        %s979 = scalar_select %p978, %s977, 0
        %s980 = sadd.s32 %s49, 1
        %p981 = scmp.lt.s32.totalorder %s980, 1
        %s982 = scalar_select %p981, %s980, 1
        %s983 = ssub.s32 %s49, 1
        %p984 = scmp.gt.s32.totalorder %s983, 0
        %s985 = scalar_select %p984, %s983, 0
        %s986 = ssub.s32 %s49, 1
        %p987 = scmp.gt.s32.totalorder %s986, 0
        %s988 = scalar_select %p987, %s986, 0
        %s989 = sadd.s32 %s49, 1
        %p990 = scmp.lt.s32.totalorder %s989, 1
        %s991 = scalar_select %p990, %s989, 1
        %s992 = ssub.s32 %s49, 1
        %p993 = scmp.gt.s32.totalorder %s992, 0
        %s994 = scalar_select %p993, %s992, 0
        %p995 = scmp.lt.s32.totalorder %s48, 1
        %s996 = scalar_select %p995, %s48, 1
        %p997 = scmp.lt.s32.totalorder %s49, 1
        %s998 = scalar_select %p997, %s49, 1
        %s999 = smul.addr %s996, 2
        %s1000 = sadd.s32 %s998, %s999
        %s1001 = smul.addr %s1000, 8
        %s1002 = scalar_lea.vmem %s12, %s1001
        %v1003 = vld [vmem:[%s767] sm:$0xff]
        %v1004 = vld [vmem:[%s767 + $0x8] sm:$0xff]
        %v1005 = vld [vmem:[%s767 + $0x10] sm:$0xff]
        %v1006 = vld [vmem:[%s817] sm:$0xff]
        %v1007 = vld [vmem:[%s817 + $0x8] sm:$0xff]
        %v1008 = vld [vmem:[%s817 + $0x10] sm:$0xff]
        %v1009 = vld [vmem:[%s797] sm:$0xff]
        %v1010 = vld [vmem:[%s847] sm:$0xff]
        %v1011 = vld [vmem:[%s867] sm:$0xff]
        %v1012 = vld [vmem:[%s867 + $0x8] sm:$0xff]
        %v1013 = vld [vmem:[%s867 + $0x10] sm:$0xff]
        %v1014 = vld [vmem:[%s877] sm:$0xff]
        %v1015 = vld [vmem:[%s877 + $0x8] sm:$0xff]
        %v1016 = vld [vmem:[%s877 + $0x10] sm:$0xff]
        %v1017 = vlaneseq
        %v1018 = vand.u32 %v1017, 127
        %vm1019 = vcmp.ge.s32.totalorder %v1018, 1
        %vm1020 = vcmp.lt.s32.totalorder %v1018, 127
        %s1021 = smul.u32 %s49, 8
        %s1022 = ssub.s32 %s1021, 8
        %v1023 = vlaneseq
        %v1024 = vshrl.u32 %v1023, 7
        %v1025 = vadd.s32 %v1024, 8
        %v1026 = vadd.s32 %v1024, 16
        %v1027 = vstv %s1022
        %v1028 = vadd.s32 %v1027, %v1024
        %v1029 = vadd.s32 %v1027, %v1025
        %v1030 = vadd.s32 %v1027, %v1026
        %vm1031 = vcmp.ge.s32.totalorder %v1028, 0
        %vm1032 = vcmp.ge.s32.totalorder %v1029, 0
        %vm1033 = vcmp.ge.s32.totalorder %v1030, 0
        %vm1034 = vcmp.lt.s32.totalorder %v1028, 16
        %vm1035 = vcmp.lt.s32.totalorder %v1029, 16
        %vm1036 = vcmp.lt.s32.totalorder %v1030, 16
        %vm1037 = vmand %vm1031, %vm1034
        %vm1038 = vmand %vm1032, %vm1035
        %vm1039 = vmand %vm1033, %vm1036
        %vm1040 = vcmp.eq.s32.totalorder %v1024, 0
        %v1041 = vmul.f32 %v1003, %v1009
        %v1042 = vsub.f32 %v1041, %v1011
        %v1043 = vand.u32 2147483647, %v1042
        %v1044 = vmul.f32 %v1006, %v1010
        %v1045 = vsub.f32 %v1044, %v1014
        %v1046 = vand.u32 2147483647, %v1045
        %v1047 = vadd.f32 %v1043, %v1046
        %v1048 = vmul.f32 %v1006, %v1009
        %v1049 = vsub.f32 %v1048, %v1011
        %v1050 = vand.u32 2147483647, %v1049
        %v1051 = vmul.f32 %v1003, %v1010
        %v1052 = vsub.f32 %v1051, %v1014
        %v1053 = vand.u32 2147483647, %v1052
        %v1054 = vadd.f32 %v1050, %v1053
        %v1055 = vmul.f32 %v1054, 0.001
        %v1056 = vadd.f32 %v1047, %v1055
        %v1057 = vsub.f32 %v1003, %v1006
        %v1058 = vand.u32 2147483647, %v1057
        %v1059 = vmul.f32 %v1058, 0.01
        %v1060 = vadd.f32 %v1056, %v1059
        %v1061 = vmul.f32 %v1004, %v1009
        %v1062 = vsub.f32 %v1061, %v1012
        %v1063 = vand.u32 2147483647, %v1062
        %v1064 = vmul.f32 %v1007, %v1010
        %v1065 = vsub.f32 %v1064, %v1015
        %v1066 = vand.u32 2147483647, %v1065
        %v1067 = vadd.f32 %v1063, %v1066
        %v1068 = vmul.f32 %v1007, %v1009
        %v1069 = vsub.f32 %v1068, %v1012
        %v1070 = vand.u32 2147483647, %v1069
        %v1071 = vmul.f32 %v1004, %v1010
        %v1072 = vsub.f32 %v1071, %v1015
        %v1073 = vand.u32 2147483647, %v1072
        %v1074 = vadd.f32 %v1070, %v1073
        %v1075 = vmul.f32 %v1074, 0.001
        %v1076 = vadd.f32 %v1067, %v1075
        %v1077 = vsub.f32 %v1004, %v1007
        %v1078 = vand.u32 2147483647, %v1077
        %v1079 = vmul.f32 %v1078, 0.01
        %v1080 = vadd.f32 %v1076, %v1079
        %v1081 = vadd.f32 %v1060, %v1080
        %v1082 = vmul.f32 %v1005, %v1009
        %v1083 = vsub.f32 %v1082, %v1013
        %v1084 = vand.u32 2147483647, %v1083
        %v1085 = vmul.f32 %v1008, %v1010
        %v1086 = vsub.f32 %v1085, %v1016
        %v1087 = vand.u32 2147483647, %v1086
        %v1088 = vadd.f32 %v1084, %v1087
        %v1089 = vmul.f32 %v1008, %v1009
        %v1090 = vsub.f32 %v1089, %v1013
        %v1091 = vand.u32 2147483647, %v1090
        %v1092 = vmul.f32 %v1005, %v1010
        %v1093 = vsub.f32 %v1092, %v1016
        %v1094 = vand.u32 2147483647, %v1093
        %v1095 = vadd.f32 %v1091, %v1094
        %v1096 = vmul.f32 %v1095, 0.001
        %v1097 = vadd.f32 %v1088, %v1096
        %v1098 = vsub.f32 %v1005, %v1008
        %v1099 = vand.u32 2147483647, %v1098
        %v1100 = vmul.f32 %v1099, 0.01
        %v1101 = vadd.f32 %v1097, %v1100
        %v1102 = vadd.f32 %v1081, %v1101
        %p1103 = scmp.gt.s32.totalorder %s49, 0
        %s1104 = scalar_select %p1103, 1, 0
        %s1105 = scvt.s32.f32 %s1104
        %v1106 = vld [vmem:[%s807 + $0x7] sm:$0x1]
        %v1107 = vstv %s1105
        %v1108 = vmul.f32 %v1106, %v1107
        %v1109 = vld [vmem:[%s857 + $0x7] sm:$0x1]
        %v1110 = vmul.f32 %v1109, %v1107
        %v1111 = vld [vmem:[%s777] sm:$0xff]
        %v1112 = vld [vmem:[%s777 + $0x8] sm:$0xff]
        %v1113 = vld [vmem:[%s777 + $0x10] sm:$0xff]
        %v1114 = vld [vmem:[%s787] sm:$0xff]
        %v1115 = vld [vmem:[%s787 + $0x8] sm:$0xff]
        %v1116 = vld [vmem:[%s787 + $0x10] sm:$0xff]
        %v1117 = vmul.f32 %v1111, 0.2989
        %v1118 = vmul.f32 %v1112, 0.587
        %v1119 = vadd.f32 %v1117, %v1118
        %v1120 = vmul.f32 %v1113, 0.114
        %v1121 = vadd.f32 %v1119, %v1120
        %v1122 = vmul.f32 %v1003, 0.2989
        %v1123 = vmul.f32 %v1004, 0.587
        %v1124 = vadd.f32 %v1122, %v1123
        %v1125 = vmul.f32 %v1005, 0.114
        %v1126 = vadd.f32 %v1124, %v1125
        %v1127 = vmul.f32 %v1114, 0.2989
        %v1128 = vmul.f32 %v1115, 0.587
        %v1129 = vadd.f32 %v1127, %v1128
        %v1130 = vmul.f32 %v1116, 0.114
        %v1131 = vadd.f32 %v1129, %v1130
        %v1132 = vsel %vm1037, 1, 0
        %v1133 = vsel %vm1038, 1, 0
        %v1134 = vsel %vm1039, 1, 0
        %vm1135 = vcmp.eq.s32.totalorder %v1132, 1
        %vm1136 = vcmp.eq.s32.totalorder %v1133, 1
        %vm1137 = vcmp.eq.s32.totalorder %v1134, 1
        %v1138 = vsel %vm1135, %v1121, 0.0
        %v1139 = vsel %vm1136, %v1126, 0.0
        %v1140 = vsel %vm1137, %v1131, 0.0
        %1141 = vrot.lane.b32.xlu0 %v1138, 1
        %v1142 = vpop.permute.xlu0 %1141
        %1143 = vrot.lane.b32.xlu0 %v1139, 1
        %v1144 = vpop.permute.xlu0 %1143
        %1145 = vrot.lane.b32.xlu0 %v1140, 1
        %v1146 = vpop.permute.xlu0 %1145
        %v1147 = vsel %vm1019, 1, 0
        %vm1148 = vcmp.eq.s32.totalorder %v1147, 1
        %v1149 = vsel %vm1148, %v1142, 0.0
        %v1150 = vsel %vm1148, %v1144, 0.0
        %v1151 = vsel %vm1148, %v1146, 0.0
        %v1152 = vsub.f32 %v1138, %v1149
        %v1153 = vsub.f32 %v1139, %v1150
        %v1154 = vsub.f32 %v1140, %v1151
        %v1155 = vand.u32 2147483647, %v1152
        %v1156 = vand.u32 2147483647, %v1153
        %v1157 = vand.u32 2147483647, %v1154
        %v1158 = vrot.slane %v1138, 7
        %v1159 = vrot.slane %v1139, 7
        %v1160 = vrot.slane %v1140, 7
        %vm1161 = vcmp.lt.s32.totalorder %v1024, 1
        %v1162 = vsel %vm1161, %v1159, %v1160
        %v1163 = vsel %vm1161, %v1158, %v1159
        %v1164 = vsel %vm1161, %v1160, %v1158
        %v1165 = vsub.f32 %v1138, %v1164
        %v1166 = vsub.f32 %v1139, %v1163
        %v1167 = vsub.f32 %v1140, %v1162
        %v1168 = vand.u32 2147483647, %v1165
        %v1169 = vand.u32 2147483647, %v1166
        %v1170 = vand.u32 2147483647, %v1167
        %v1171 = vsel %vm1135, %v1168, 0.0
        %v1172 = vsel %vm1136, %v1169, 0.0
        %v1173 = vsel %vm1137, %v1170, 0.0
        %v1174 = vrot.slane %v1155, 7
        %v1175 = vrot.slane %v1156, 7
        %v1176 = vsel %vm1161, %v1174, %v1175
        %v1177 = vadd.f32 %v1156, %v1176
        %v1178 = vrot.slane %v1156, 1
        %v1179 = vrot.slane %v1157, 1
        %vm1180 = vcmp.lt.s32.totalorder %v1024, 7
        %v1181 = vsel %vm1180, %v1178, %v1179
        %v1182 = vadd.f32 %v1177, %v1181
        %1183 = vrot.lane.b32.xlu0 %v1182, 1
        %v1184 = vpop.permute.xlu0 %1183
        %v1185 = vsel %vm1148, %v1184, 0.0
        %v1186 = vadd.f32 %v1182, %v1185
        %1187 = vrot.lane.b32.xlu0 %v1182, 127
        %v1188 = vpop.permute.xlu0 %1187
        %v1189 = vsel %vm1020, 1, 0
        %vm1190 = vcmp.eq.s32.totalorder %v1189, 1
        %v1191 = vsel %vm1190, %v1188, 0.0
        %v1192 = vadd.f32 %v1186, %v1191
        %v1193 = vrot.slane %v1171, 7
        %v1194 = vrot.slane %v1172, 7
        %v1195 = vsel %vm1161, %v1193, %v1194
        %v1196 = vadd.f32 %v1172, %v1195
        %v1197 = vrot.slane %v1172, 1
        %v1198 = vrot.slane %v1173, 1
        %v1199 = vsel %vm1180, %v1197, %v1198
        %v1200 = vadd.f32 %v1196, %v1199
        %1201 = vrot.lane.b32.xlu0 %v1200, 1
        %v1202 = vpop.permute.xlu0 %1201
        %v1203 = vsel %vm1148, %v1202, 0.0
        %v1204 = vadd.f32 %v1200, %v1203
        %1205 = vrot.lane.b32.xlu0 %v1200, 127
        %v1206 = vpop.permute.xlu0 %1205
        %v1207 = vsel %vm1190, %v1206, 0.0
        %v1208 = vadd.f32 %v1204, %v1207
        %1209 = vrot.lane.b32.xlu0 %v1009, 1
        %v1210 = vpop.permute.xlu0 %1209
        %v1211 = vsel %vm1148, %v1210, 0.0
        %v1212 = vsub.f32 %v1009, %v1211
        %v1213 = vand.u32 2147483647, %v1212
        %v1214 = vrot.slane %v1009, 7
        %v1215 = vsel %vm1040, 1, 0
        %vm1216 = vcmp.eq.s32.totalorder %v1215, 1
        %v1217 = vperm.slane %v1108, 0
        %v1218 = vsel %vm1216, %v1217, %v1214
        %v1219 = vsub.f32 %v1009, %v1218
        %v1220 = vand.u32 2147483647, %v1219
        %v1221 = vmul.f32 %v1192, -1.1111112
        %v1222 = vmul.f32 %v1221, 1.442695
        %v1223 = vpow.pop %v1222
        %v1224 = vmul.f32 %v1213, %v1223
        %v1225 = vmul.f32 %v1208, -1.1111112
        %v1226 = vmul.f32 %v1225, 1.442695
        %v1227 = vpow.pop %v1226
        %v1228 = vmul.f32 %v1220, %v1227
        %v1229 = vadd.f32 %v1224, %v1228
        %v1230 = vld [vmem:[%s827] sm:$0xff]
        %v1231 = vld [vmem:[%s827 + $0x8] sm:$0xff]
        %v1232 = vld [vmem:[%s827 + $0x10] sm:$0xff]
        %v1233 = vld [vmem:[%s837] sm:$0xff]
        %v1234 = vld [vmem:[%s837 + $0x8] sm:$0xff]
        %v1235 = vld [vmem:[%s837 + $0x10] sm:$0xff]
        %v1236 = vmul.f32 %v1230, 0.2989
        %v1237 = vmul.f32 %v1231, 0.587
        %v1238 = vadd.f32 %v1236, %v1237
        %v1239 = vmul.f32 %v1232, 0.114
        %v1240 = vadd.f32 %v1238, %v1239
        %v1241 = vmul.f32 %v1006, 0.2989
        %v1242 = vmul.f32 %v1007, 0.587
        %v1243 = vadd.f32 %v1241, %v1242
        %v1244 = vmul.f32 %v1008, 0.114
        %v1245 = vadd.f32 %v1243, %v1244
        %v1246 = vmul.f32 %v1233, 0.2989
        %v1247 = vmul.f32 %v1234, 0.587
        %v1248 = vadd.f32 %v1246, %v1247
        %v1249 = vmul.f32 %v1235, 0.114
        %v1250 = vadd.f32 %v1248, %v1249
        %v1251 = vsel %vm1135, %v1240, 0.0
        %v1252 = vsel %vm1136, %v1245, 0.0
        %v1253 = vsel %vm1137, %v1250, 0.0
        %1254 = vrot.lane.b32.xlu0 %v1251, 1
        %v1255 = vpop.permute.xlu0 %1254
        %1256 = vrot.lane.b32.xlu0 %v1252, 1
        %v1257 = vpop.permute.xlu0 %1256
        %1258 = vrot.lane.b32.xlu0 %v1253, 1
        %v1259 = vpop.permute.xlu0 %1258
        %v1260 = vsel %vm1148, %v1255, 0.0
        %v1261 = vsel %vm1148, %v1257, 0.0
        %v1262 = vsel %vm1148, %v1259, 0.0
        %v1263 = vsub.f32 %v1251, %v1260
        %v1264 = vsub.f32 %v1252, %v1261
        %v1265 = vsub.f32 %v1253, %v1262
        %v1266 = vand.u32 2147483647, %v1263
        %v1267 = vand.u32 2147483647, %v1264
        %v1268 = vand.u32 2147483647, %v1265
        %v1269 = vrot.slane %v1251, 7
        %v1270 = vrot.slane %v1252, 7
        %v1271 = vrot.slane %v1253, 7
        %v1272 = vsel %vm1161, %v1270, %v1271
        %v1273 = vsel %vm1161, %v1269, %v1270
        %v1274 = vsel %vm1161, %v1271, %v1269
        %v1275 = vsub.f32 %v1251, %v1274
        %v1276 = vsub.f32 %v1252, %v1273
        %v1277 = vsub.f32 %v1253, %v1272
        %v1278 = vand.u32 2147483647, %v1275
        %v1279 = vand.u32 2147483647, %v1276
        %v1280 = vand.u32 2147483647, %v1277
        %v1281 = vsel %vm1135, %v1278, 0.0
        %v1282 = vsel %vm1136, %v1279, 0.0
        %v1283 = vsel %vm1137, %v1280, 0.0
        %v1284 = vrot.slane %v1266, 7
        %v1285 = vrot.slane %v1267, 7
        %v1286 = vsel %vm1161, %v1284, %v1285
        %v1287 = vadd.f32 %v1267, %v1286
        %v1288 = vrot.slane %v1267, 1
        %v1289 = vrot.slane %v1268, 1
        %v1290 = vsel %vm1180, %v1288, %v1289
        %v1291 = vadd.f32 %v1287, %v1290
        %1292 = vrot.lane.b32.xlu0 %v1291, 1
        %v1293 = vpop.permute.xlu0 %1292
        %v1294 = vsel %vm1148, %v1293, 0.0
        %v1295 = vadd.f32 %v1291, %v1294
        %1296 = vrot.lane.b32.xlu0 %v1291, 127
        %v1297 = vpop.permute.xlu0 %1296
        %v1298 = vsel %vm1190, %v1297, 0.0
        %v1299 = vadd.f32 %v1295, %v1298
        %v1300 = vrot.slane %v1281, 7
        %v1301 = vrot.slane %v1282, 7
        %v1302 = vsel %vm1161, %v1300, %v1301
        %v1303 = vadd.f32 %v1282, %v1302
        %v1304 = vrot.slane %v1282, 1
        %v1305 = vrot.slane %v1283, 1
        %v1306 = vsel %vm1180, %v1304, %v1305
        %v1307 = vadd.f32 %v1303, %v1306
        %1308 = vrot.lane.b32.xlu0 %v1307, 1
        %v1309 = vpop.permute.xlu0 %1308
        %v1310 = vsel %vm1148, %v1309, 0.0
        %v1311 = vadd.f32 %v1307, %v1310
        %1312 = vrot.lane.b32.xlu0 %v1307, 127
        %v1313 = vpop.permute.xlu0 %1312
        %v1314 = vsel %vm1190, %v1313, 0.0
        %v1315 = vadd.f32 %v1311, %v1314
        %1316 = vrot.lane.b32.xlu0 %v1010, 1
        %v1317 = vpop.permute.xlu0 %1316
        %v1318 = vsel %vm1148, %v1317, 0.0
        %v1319 = vsub.f32 %v1010, %v1318
        %v1320 = vand.u32 2147483647, %v1319
        %v1321 = vrot.slane %v1010, 7
        %v1322 = vperm.slane %v1110, 0
        %v1323 = vsel %vm1216, %v1322, %v1321
        %v1324 = vsub.f32 %v1010, %v1323
        %v1325 = vand.u32 2147483647, %v1324
        %v1326 = vmul.f32 %v1299, -1.1111112
        %v1327 = vmul.f32 %v1326, 1.442695
        %v1328 = vpow.pop %v1327
        %v1329 = vmul.f32 %v1320, %v1328
        %v1330 = vmul.f32 %v1315, -1.1111112
        %v1331 = vmul.f32 %v1330, 1.442695
        %v1332 = vpow.pop %v1331
        %v1333 = vmul.f32 %v1325, %v1332
        %v1334 = vadd.f32 %v1329, %v1333
        %v1335 = vmul.f32 %v1102, 8.138021e-05
        %v1336 = vadd.f32 %v1229, %v1334
        %v1337 = vmul.f32 %v1336, 2.4414063e-05
        %v1338 = vadd.f32 %v1335, %v1337
        %1339 = vst [vmem:[%s1002] sm:$0xff] %v1338
        %p1340 = scmp.lt.s32.totalorder %s48, 1
        %s1341 = scalar_select %p1340, %s48, 1
        %p1342 = scmp.lt.s32.totalorder %s49, 1
        %s1343 = scalar_select %p1342, %s49, 1
        %s1344 = smul.addr %s1341, 2
        %s1345 = sadd.s32 %s1343, %s1344
        %s1346 = smul.addr %s1345, 8
        %s1347 = scalar_lea.vmem %s12, %s1346
        // Predicated region
        $region117: #{_lambda_.1} parent=67 // pred_check
          %p1348 = pneg %p448
        $region118: #{_lambda_.1} parent=67 // pred_check_branch
          %1350 = sbr.rel (%p1348) target = $region120
        $region119: #{_lambda_.1} parent=67 // pred_region
          _
        $region120: #{_lambda_.1} parent=67 // pred_fallthru
          _
      $region68: #{_lambda_.1} parent=5 // pred_fallthru
        _
      %p1351 = scmp.le.s32.totalorder 2, %s39
      // Predicated region
      $region121: #{_lambda_.1} parent=5 // pred_check
        %p1352 = pneg %p1351
      $region122: #{_lambda_.1} parent=5 // pred_check_branch
        %1354 = sbr.rel (%p1352) target = $region124
      $region123: #{_lambda_.1} parent=5 // pred_region
        %s1355 = ssub.s32 %s39, 2
        // Predicated region
        $region125: #{_lambda_.1} parent=123 // pred_check
          %p1356 = pneg %p454
        $region126: #{_lambda_.1} parent=123 // pred_check_branch
          %1358 = sbr.rel (%p1356) target = $region128
        $region127: #{_lambda_.1} parent=123 // pred_region
          %p1359 = scmp.lt.s32.totalorder %s50, 1
          %s1360 = scalar_select %p1359, %s50, 1
          %p1361 = scmp.lt.s32.totalorder %s51, 1
          %s1362 = scalar_select %p1361, %s51, 1
          %s1363 = smul.addr %s1360, 2
          %s1364 = sadd.s32 %s1362, %s1363
          %s1365 = smul.addr %s1364, 8
          %s1366 = scalar_lea.vmem %s12, %s1365
        $region128: #{_lambda_.1} parent=123 // pred_fallthru
          _
      $region124: #{_lambda_.1} parent=5 // pred_fallthru
        _
    $region6: #{_lambda_.1} parent=1 // loop_footer
      %s43 = sadd.s32 1, %s39
    $region7: #{_lambda_.1} parent=1 // loop_footer_branch
      %38 = sbr.rel target = $region3
    $region8: #{_lambda_.1} parent=1 // loop_exit
      _
    %1367 = vsyncpa [#allocation3], 1
    %s1368 = scalar_lea.sflag [#allocation3], 1
    %1369 = vsyncpa %s1368, 1
    %1370 = vsyncpa [#allocation5], 1
    %s1371 = scalar_lea.sflag [#allocation5], 1
    %1372 = vsyncpa %s1371, 1
    %1373 = vsyncpa [#allocation8], 1
    %s1374 = scalar_lea.sflag [#allocation8], 1
    %1375 = vsyncpa %s1374, 1
    %1376 = vsyncpa [#allocation11], 1
    %s1377 = scalar_lea.sflag [#allocation11], 1
    %1378 = vsyncpa %s1377, 1
    %1379 = vsyncpa [#allocation14], 1
    %s1380 = scalar_lea.sflag [#allocation14], 1
    %1381 = vsyncpa %s1380, 1
    %1382 = vsyncpa [#allocation17], 1
    %s1383 = scalar_lea.sflag [#allocation17], 1
    %1384 = vsyncpa %s1383, 1
    %1385 = vsyncpa [#allocation20], 1
    %s1386 = scalar_lea.sflag [#allocation20], 1
    %1387 = vsyncpa %s1386, 1

</llo_original>
